<compile_context>
chip_gen: v7x
topology: tpu7x:2x2x1
jax: 0.10.0
libtpu: 0.0.40
codegen_flags: <defaults>
</compile_context>

<pallas_src>
import jax
import jax.numpy as jnp
from jax.experimental import pallas as pl
from jax.experimental.pallas import tpu as pltpu


# ----------------------------------------------------------------------------
# Kernel: one (tile_b, emb) @ (emb, tile_v) -> (tile_b, tile_v) MXU matmul.
# ----------------------------------------------------------------------------
def _hidden_times_wt_kernel(hid_ref, wt_ref, o_ref):
    o_ref[...] = jnp.dot(
        hid_ref[...], wt_ref[...], preferred_element_type=jnp.float32
    ).astype(o_ref.dtype)


_TILE_B_CANDIDATES = (256, 128, 64, 32, 16, 8)
_TILE_V_CANDIDATES = (1024, 512, 256, 128)


def _pick_tile(dim, candidates):
    for c in candidates:
        if dim % c == 0:
            return c
    return dim  # fall back to the full extent (block dim == array dim is legal)


def _hidden_times_wt(hidden_bf16, wt_bf16, *, out_dtype=jnp.float32):
    """logits = hidden @ WT, tiled so each WT tile is DMA'd from HBM once."""
    batch, emb = hidden_bf16.shape
    emb2, vocab = wt_bf16.shape
    assert emb2 == emb, (wt_bf16.shape, hidden_bf16.shape)

    tile_b = _pick_tile(batch, _TILE_B_CANDIDATES)
    tile_v = _pick_tile(vocab, _TILE_V_CANDIDATES)

    # vocab is the OUTER grid axis: the WT block index (0, v) is constant
    # across the inner batch steps, so WT streams from HBM exactly once.
    grid = (vocab // tile_v, batch // tile_b)

    return pl.pallas_call(
        _hidden_times_wt_kernel,
        out_shape=jax.ShapeDtypeStruct((batch, vocab), out_dtype),
        grid_spec=pltpu.PrefetchScalarGridSpec(
            num_scalar_prefetch=0,
            grid=grid,
            in_specs=[
                # hidden tile: tiny bf16 block, revisited per vocab tile.
                pl.BlockSpec((tile_b, emb), lambda v, b: (b, 0)),
                # WT tile: lane-dense (multiple of 128), streamed once.
                pl.BlockSpec((emb, tile_v), lambda v, b: (0, v)),
            ],
            out_specs=pl.BlockSpec((tile_b, tile_v), lambda v, b: (b, v)),
        ),
        compiler_params=pltpu.CompilerParams(
            # Every output block is written exactly once and there is no
            # scratch carried across steps -> both axes are safely parallel
            # (lets v7x shard the grid across its 2 TensorCores).
            dimension_semantics=("parallel", "parallel"),
        ),
    )(hidden_bf16, wt_bf16)


# ----------------------------------------------------------------------------
# Public forward passes.
# ----------------------------------------------------------------------------
@jax.jit
def word2vec_forward_idx(idx, w, wt):
    """logits[b, :] = W[idx[b], :] @ WT  ==  (one_hot(idx) @ W) @ WT."""
    # X @ W for one-hot X is a row gather; done here (XLA gather) so the
    # Pallas kernel sees a dense, already-bf16 `hidden` operand.
    hidden = jnp.take(w, idx, axis=0).astype(jnp.bfloat16)
    return _hidden_times_wt(hidden, wt.astype(jnp.bfloat16))


@jax.jit
def word2vec_forward(x_onehot, w, wt):
    """forward(X) of the original module for one-hot X (skip-gram center words).

    Note: X must be strictly one-hot; multi-hot / weighted X is not supported
    by the gather path.
    """
    # TODO(synk): non-one-hot X would need a dense X @ W first stage.
    idx = jnp.argmax(x_onehot, axis=-1).astype(jnp.int32)
    hidden = jnp.take(w, idx, axis=0).astype(jnp.bfloat16)
    return _hidden_times_wt(hidden, wt.astype(jnp.bfloat16))


if __name__ == "__main__":
    # Small but tile-friendly shapes (lane-dense vocab, 8-multiple batch).
    vocab_size = 2048
    embedding_size = 128
    batch = 512

    key = jax.random.PRNGKey(0)
    k_w, k_wt, k_idx = jax.random.split(key, 3)

    # Parameter init matches torch: -2*rand+1 == Uniform(-1, 1).
    W = jax.random.uniform(k_w, (vocab_size, embedding_size),
                           dtype=jnp.float32, minval=-1.0, maxval=1.0)
    WT = jax.random.uniform(k_wt, (embedding_size, vocab_size),
                            dtype=jnp.float32, minval=-1.0, maxval=1.0)

    # Skip-gram inputs: center-word indices (== the one-hot rows of X).
    idx = jax.random.randint(k_idx, (batch,), 0, vocab_size, dtype=jnp.int32)
    X = jax.nn.one_hot(idx, vocab_size, dtype=jnp.float32)

    out = jax.block_until_ready(word2vec_forward_idx(idx, W, WT))
    assert out.shape == (batch, vocab_size) and out.dtype == jnp.float32

    # Interface-compatible path forward(X) must reproduce the same result.
    out_x = jax.block_until_ready(word2vec_forward(X, W, WT))
    assert jnp.array_equal(out, out_x)

    # Reference 1 (tight): same math as the kernel (gather, bf16 inputs, f32 acc).
    hid_bf16 = W[idx].astype(jnp.bfloat16)
    ref_tight = jnp.dot(hid_bf16.astype(jnp.float32),
                        WT.astype(jnp.bfloat16).astype(jnp.float32))
    max_err_tight = float(jnp.max(jnp.abs(out - ref_tight)))
    assert max_err_tight < 2e-2, max_err_tight

    # Reference 2 (loose sanity): original full-f32 module math X @ W @ WT.
    ref_full = (X @ W) @ WT
    max_err_full = float(jnp.max(jnp.abs(out - ref_full)))
    assert max_err_full < 0.5, max_err_full  # bf16-quantization level error

    print("KERNEL_OK")
</pallas_src>

<mosaic_0001>
module attributes {stable_mosaic.version = 11 : i64} {
  func.func @_hidden_times_wt_kernel(%arg0: i32, %arg1: i32, %arg2: memref<256x128xbf16, #tpu.memory_space<vmem>>, %arg3: memref<128x1024xbf16, #tpu.memory_space<vmem>>, %arg4: memref<256x1024xf32, #tpu.memory_space<vmem>>) attributes {dimension_semantics = [#tpu.dimension_semantics<parallel>, #tpu.dimension_semantics<parallel>], iteration_bounds = array<i64: 2, 2>, scalar_prefetch = 0 : i64, scratch_operands = 0 : i64, tpu.core_type = #tpu.core_type<tc>, window_params = [{transform_indices = @transform_0, window_bounds = array<i64: 256, 128>}, {transform_indices = @transform_1, window_bounds = array<i64: 128, 1024>}, {transform_indices = @transform_2, window_bounds = array<i64: 256, 1024>}]} {
    %c0 = arith.constant 0 : index
    %c0_0 = arith.constant 0 : index
    %0 = vector.load %arg2[%c0, %c0_0] : memref<256x128xbf16, #tpu.memory_space<vmem>>, vector<256x128xbf16>
    %c0_1 = arith.constant 0 : index
    %c0_2 = arith.constant 0 : index
    %1 = vector.load %arg3[%c0_1, %c0_2] : memref<128x1024xbf16, #tpu.memory_space<vmem>>, vector<128x1024xbf16>
    %cst = arith.constant dense<0.000000e+00> : vector<256x1024xf32>
    %2 = tpu.matmul %0, %1, %cst {dimension_numbers = #tpu.dot_dimension_numbers<[1], [0], [0], [1], [0, 0, 1, 1], [], []>} : vector<256x128xbf16>, vector<128x1024xbf16>, vector<256x1024xf32> -> vector<256x1024xf32>
    %c0_3 = arith.constant 0 : index
    %c0_4 = arith.constant 0 : index
    %3 = vector.load %arg4[%c0_3, %c0_4] : memref<256x1024xf32, #tpu.memory_space<vmem>>, vector<256x1024xf32>
    tpu.vector_store %arg4[%c0_3, %c0_4], %2 {strides = array<i32>} : memref<256x1024xf32, #tpu.memory_space<vmem>>, vector<256x1024xf32>,
    return
  }
  func.func @transform_0(%arg0: i32, %arg1: i32) -> (i32, i32) {
    %c0_i32 = arith.constant 0 : i32
    %c0_i32_0 = arith.constant 0 : i32
    return %arg1, %c0_i32 : i32, i32
  }
  func.func @transform_1(%arg0: i32, %arg1: i32) -> (i32, i32) {
    %c0_i32 = arith.constant 0 : i32
    %c0_i32_0 = arith.constant 0 : i32
    return %c0_i32, %arg0 : i32, i32
  }
  func.func @transform_2(%arg0: i32, %arg1: i32) -> (i32, i32) {
    %c0_i32 = arith.constant 0 : i32
    return %arg1, %arg0 : i32, i32
  }
}

</mosaic_0001>

<llo_original>
// kernel: word2vec_forward_idx.1
$region0: #{word2vec_forward_idx.1}
  #allocation0 [shape = 'u32[]', space=smem, size = 0x4, offset = 0x4, fixed_abs, tag = 'smem constant byte address 0x4 - core index']
  #allocation1 [shape = 'u32[144,128]{1,0:T(1,128)}', space=vmem, size = 0x12000, scoped, tag = 'internal scratch']
  %s0 = inlined_call_operand.vmem [shape: bf16[512,128], index: 0, kind: input, shape index: {}]
  %s1 = inlined_call_operand.vmem [shape: bf16[128,2048], index: 1, kind: input, shape index: {}]
  %s2 = inlined_call_operand.hbm [shape: f32[512,2048], index: 2, kind: output, shape index: {}]
  %s3 = sld [smem:[#allocation0]]
  $region64: #{word2vec_forward_idx.1} parent=0
    _
  %s5 = ssub.s32 1, %s3
  %s6 = scalar_select 0, %s5, %s3
  $region1: #{word2vec_forward_idx.1} parent=0
    #allocation2 [shape = 'u8[524288]{0}', space=vmem, size = 0x80000, scoped, tag = 'input window, operand 1']
    #allocation3 [shape = 'u8[2097152]{0}', space=vmem, size = 0x200000, scoped, tag = 'output window, operand 0']
    #allocation4 [shape = 's32[2]{0}', space=sflag, size = 0x8, scoped, tag = 'scoped memory for word2vec_forward_idx.1']
    %7 = vsyncpa [#allocation4], 0
    %s8 = scalar_lea.sflag [#allocation4], 1
    %9 = vsyncpa %s8, 0
    loop: start=0, step=1, limit=6
    $region2: #{word2vec_forward_idx.1} parent=1 // loop_pre_header
      _
    $region3: #{word2vec_forward_idx.1} parent=1 // loop_header
      %s11 = sphi 0, %s15
      %p12 = scmp.ge.s32.totalorder %s11, 6
      %s18 = sphi 0, %s30
      %s19 = sphi 0, %s26
      %s20 = sphi 0, %s18
      %s21 = sphi 0, %s19
      %s22 = sphi 0, %s20
      %s23 = sphi 0, %s21
      %s33 = sphi 0, %s35
      %s36 = sphi 0, %s33
      %s37 = sphi 0, %s36
      %s53 = sphi 0, %s37
      %s59 = sphi 0, %s61
      %s62 = sphi 0, %s59
      %s63 = sphi 0, %s62
      %s79 = sphi 0, %s63
      %s87 = sphi 0, %s89
      %s90 = sphi 0, %s87
      %s91 = sphi 0, %s90
      %s107 = sphi 0, %s91
    $region4: #{word2vec_forward_idx.1} parent=1 // loop_header_branch
      %14 = sbr.rel (%p12) target = $region8
    $region5: #{word2vec_forward_idx.1} parent=1 // loop_body
      %s16 = ssub.s32 %s11, 1
      %s17 = ssub.s32 %s11, 2
      %s24 = sadd.s32 1, %s19
      %p25 = scmp.ge.s32.totalorder %s24, 2
      %s26 = scalar_select %p25, 0, %s24
      %s27 = sadd.s32 1, %s18
      %s28 = scalar_select %p25, %s27, %s18
      %p29 = scmp.ge.s32.totalorder %s28, 2
      %s30 = scalar_select %p29, 0, %s28
      %s31 = ssub.s32 %s19, %s26
      %p32 = scmp.eq.s32.totalorder %s31, 0
      %s34 = sadd.s32 %s33, 1
      %s35 = scalar_select %p32, %s33, %s34
      %p38 = pneg %p32
      %p39 = scmp.eq.s32.totalorder %s11, 3
      %p40 = por %p38, %p39
      %p41 = scmp.ne.s32.totalorder %s33, %s36
      %p42 = scmp.eq.s32.totalorder %s11, 0
      %p43 = por %p41, %p42
      %p44 = scmp.ne.s32.totalorder %s33, %s36
      %p45 = scmp.eq.s32.totalorder %s16, 3
      %p46 = por %p44, %p45
      %p47 = scmp.ne.s32.totalorder %s36, %s37
      %p48 = scmp.eq.s32.totalorder %s16, 0
      %p49 = por %p47, %p48
      %p50 = scmp.ne.s32.totalorder %s36, %s37
      %p51 = scmp.eq.s32.totalorder %s17, 3
      %p52 = por %p50, %p51
      %p54 = scmp.ne.s32.totalorder %s37, %s53
      %p55 = scmp.eq.s32.totalorder %s17, 0
      %p56 = por %p54, %p55
      %s57 = ssub.s32 %s18, %s30
      %p58 = scmp.eq.s32.totalorder %s57, 0
      %s60 = sadd.s32 %s59, 1
      %s61 = scalar_select %p58, %s59, %s60
      %p64 = pneg %p58
      %p65 = scmp.eq.s32.totalorder %s11, 3
      %p66 = por %p64, %p65
      %p67 = scmp.ne.s32.totalorder %s59, %s62
      %p68 = scmp.eq.s32.totalorder %s11, 0
      %p69 = por %p67, %p68
      %p70 = scmp.ne.s32.totalorder %s59, %s62
      %p71 = scmp.eq.s32.totalorder %s16, 3
      %p72 = por %p70, %p71
      %p73 = scmp.ne.s32.totalorder %s62, %s63
      %p74 = scmp.eq.s32.totalorder %s16, 0
      %p75 = por %p73, %p74
      %p76 = scmp.ne.s32.totalorder %s62, %s63
      %p77 = scmp.eq.s32.totalorder %s17, 3
      %p78 = por %p76, %p77
      %p80 = scmp.ne.s32.totalorder %s63, %s79
      %p81 = scmp.eq.s32.totalorder %s17, 0
      %p82 = por %p80, %p81
      %s83 = ssub.s32 %s19, %s26
      %s84 = ssub.s32 %s18, %s30
      %s85 = sor.u32 %s83, %s84
      %p86 = scmp.eq.s32.totalorder %s85, 0
      %s88 = sadd.s32 %s87, 1
      %s89 = scalar_select %p86, %s87, %s88
      %p92 = pneg %p86
      %p93 = scmp.eq.s32.totalorder %s11, 3
      %p94 = por %p92, %p93
      %p95 = scmp.ne.s32.totalorder %s87, %s90
      %p96 = scmp.eq.s32.totalorder %s11, 0
      %p97 = por %p95, %p96
      %p98 = scmp.ne.s32.totalorder %s87, %s90
      %p99 = scmp.eq.s32.totalorder %s16, 3
      %p100 = por %p98, %p99
      %p101 = scmp.ne.s32.totalorder %s90, %s91
      %p102 = scmp.eq.s32.totalorder %s16, 0
      %p103 = por %p101, %p102
      %p104 = scmp.ne.s32.totalorder %s90, %s91
      %p105 = scmp.eq.s32.totalorder %s17, 3
      %p106 = por %p104, %p105
      %p108 = scmp.ne.s32.totalorder %s91, %s107
      %p109 = scmp.eq.s32.totalorder %s17, 0
      %p110 = por %p108, %p109
      %p111 = scmp.le.s32.totalorder 1, %s11
      %p112 = scmp.lt.s32.totalorder %s11, 5
      %p113 = pnand %p111, %p112
      %p114 = pneg %p113
      // Predicated region
      $region9: #{word2vec_forward_idx.1} parent=5 // pred_check
        _
      $region10: #{word2vec_forward_idx.1} parent=5 // pred_check_branch
        %116 = sbr.rel (%p113) target = $region12
      $region11: #{word2vec_forward_idx.1} parent=5 // pred_region
        %s117 = ssub.s32 %s11, 1
      $region12: #{word2vec_forward_idx.1} parent=5 // pred_fallthru
        _
      %p118 = scmp.lt.s32.totalorder %s11, 4
      // Predicated region
      $region13: #{word2vec_forward_idx.1} parent=5 // pred_check
        %p119 = pneg %p118
      $region14: #{word2vec_forward_idx.1} parent=5 // pred_check_branch
        %121 = sbr.rel (%p119) target = $region16
      $region15: #{word2vec_forward_idx.1} parent=5 // pred_region
        // Predicated region
        $region17: #{word2vec_forward_idx.1} parent=15 // pred_check
          %p122 = pneg %p43
        $region18: #{word2vec_forward_idx.1} parent=15 // pred_check_branch
          %124 = sbr.rel (%p122) target = $region20
        $region19: #{word2vec_forward_idx.1} parent=15 // pred_region
          %s125 = smul.u32 32, %s19
          %p126 = scmp.lt.s32.totalorder %s125, 63
          %s127 = scalar_select %p126, %s125, 63
          %s128 = smul.addr %s127, 4
          %s129 = scalar_lea.vmem %s0, %s128
          %s130 = smul.u32 32, %s19
        $region20: #{word2vec_forward_idx.1} parent=15 // pred_fallthru
          _
        // Predicated region
        $region21: #{word2vec_forward_idx.1} parent=15 // pred_check
          %p131 = pneg %p69
        $region22: #{word2vec_forward_idx.1} parent=15 // pred_check_branch
          %133 = sbr.rel (%p131) target = $region24
        $region23: #{word2vec_forward_idx.1} parent=15 // pred_region
          %s134 = sand.u32 %s59, 1
          %s135 = sand.u32 %s59, 1
          %s136 = smul.addr %s135, 512
          %s137 = scalar_lea.vmem [#allocation2], %s136
          %s138 = smul.u32 8, %s18
          %s139 = smul.addr %s138, 4
          %s140 = scalar_lea.vmem %s1, %s139
          // Predicated region
          $region25: #{word2vec_forward_idx.1} parent=23 // pred_check
            _
          $region26: #{word2vec_forward_idx.1} parent=23 // pred_check_branch
            %142 = sbr.rel (0) target = $region28
          $region27: #{word2vec_forward_idx.1} parent=23 // pred_region
            // Predicated region
            $region29: #{word2vec_forward_idx.1} parent=27 // pred_check
              _
            $region30: #{word2vec_forward_idx.1} parent=27 // pred_check_branch
              %144 = sbr.rel (0) target = $region32
            $region31: #{word2vec_forward_idx.1} parent=27 // pred_region
              loop: start=0, step=1, limit=1
              $region33: #{word2vec_forward_idx.1} parent=31 // loop_pre_header
                _
              $region34: #{word2vec_forward_idx.1} parent=31 // loop_header
                %s146 = sphi 0, %s150
                %p147 = scmp.ge.s32.totalorder %s146, 1
                %s151 = sphi %s140, %s140
                %s152 = sphi %s137, %s137
              $region35: #{word2vec_forward_idx.1} parent=31 // loop_header_branch
                %149 = sbr.rel (%p147) target = $region39
              $region36: #{word2vec_forward_idx.1} parent=31 // loop_body
                %v153 = vld [vmem:[%s151] sm:$0xff]
                %154 = vst [vmem:[%s152] sm:$0xff] %v153
                %v155 = vld [vmem:[%s151 + $0x8] sm:$0xff]
                %156 = vst [vmem:[%s152 + $0x8] sm:$0xff] %v155
                %v157 = vld [vmem:[%s151 + $0x10] sm:$0xff]
                %158 = vst [vmem:[%s152 + $0x10] sm:$0xff] %v157
                %v159 = vld [vmem:[%s151 + $0x18] sm:$0xff]
                %160 = vst [vmem:[%s152 + $0x18] sm:$0xff] %v159
                %v161 = vld [vmem:[%s151 + $0x40] sm:$0xff]
                %162 = vst [vmem:[%s152 + $0x20] sm:$0xff] %v161
                %v163 = vld [vmem:[%s151 + $0x48] sm:$0xff]
                %164 = vst [vmem:[%s152 + $0x28] sm:$0xff] %v163
                %v165 = vld [vmem:[%s151 + $0x50] sm:$0xff]
                %166 = vst [vmem:[%s152 + $0x30] sm:$0xff] %v165
                %v167 = vld [vmem:[%s151 + $0x58] sm:$0xff]
                %168 = vst [vmem:[%s152 + $0x38] sm:$0xff] %v167
                %v169 = vld [vmem:[%s151 + $0x80] sm:$0xff]
                %170 = vst [vmem:[%s152 + $0x40] sm:$0xff] %v169
                %v171 = vld [vmem:[%s151 + $0x88] sm:$0xff]
                %172 = vst [vmem:[%s152 + $0x48] sm:$0xff] %v171
                %v173 = vld [vmem:[%s151 + $0x90] sm:$0xff]
                %174 = vst [vmem:[%s152 + $0x50] sm:$0xff] %v173
                %v175 = vld [vmem:[%s151 + $0x98] sm:$0xff]
                %176 = vst [vmem:[%s152 + $0x58] sm:$0xff] %v175
                %v177 = vld [vmem:[%s151 + $0xc0] sm:$0xff]
                %178 = vst [vmem:[%s152 + $0x60] sm:$0xff] %v177
                %v179 = vld [vmem:[%s151 + $0xc8] sm:$0xff]
                %180 = vst [vmem:[%s152 + $0x68] sm:$0xff] %v179
                %v181 = vld [vmem:[%s151 + $0xd0] sm:$0xff]
                %182 = vst [vmem:[%s152 + $0x70] sm:$0xff] %v181
                %v183 = vld [vmem:[%s151 + $0xd8] sm:$0xff]
                %184 = vst [vmem:[%s152 + $0x78] sm:$0xff] %v183
                %v185 = vld [vmem:[%s151 + $0x100] sm:$0xff]
                %186 = vst [vmem:[%s152 + $0x80] sm:$0xff] %v185
                %v187 = vld [vmem:[%s151 + $0x108] sm:$0xff]
                %188 = vst [vmem:[%s152 + $0x88] sm:$0xff] %v187
                %v189 = vld [vmem:[%s151 + $0x110] sm:$0xff]
                %190 = vst [vmem:[%s152 + $0x90] sm:$0xff] %v189
                %v191 = vld [vmem:[%s151 + $0x118] sm:$0xff]
                %192 = vst [vmem:[%s152 + $0x98] sm:$0xff] %v191
                %v193 = vld [vmem:[%s151 + $0x140] sm:$0xff]
                %194 = vst [vmem:[%s152 + $0xa0] sm:$0xff] %v193
                %v195 = vld [vmem:[%s151 + $0x148] sm:$0xff]
                %196 = vst [vmem:[%s152 + $0xa8] sm:$0xff] %v195
                %v197 = vld [vmem:[%s151 + $0x150] sm:$0xff]
                %198 = vst [vmem:[%s152 + $0xb0] sm:$0xff] %v197
                %v199 = vld [vmem:[%s151 + $0x158] sm:$0xff]
                %200 = vst [vmem:[%s152 + $0xb8] sm:$0xff] %v199
                %v201 = vld [vmem:[%s151 + $0x180] sm:$0xff]
                %202 = vst [vmem:[%s152 + $0xc0] sm:$0xff] %v201
                %v203 = vld [vmem:[%s151 + $0x188] sm:$0xff]
                %204 = vst [vmem:[%s152 + $0xc8] sm:$0xff] %v203
                %v205 = vld [vmem:[%s151 + $0x190] sm:$0xff]
                %206 = vst [vmem:[%s152 + $0xd0] sm:$0xff] %v205
                %v207 = vld [vmem:[%s151 + $0x198] sm:$0xff]
                %208 = vst [vmem:[%s152 + $0xd8] sm:$0xff] %v207
                %v209 = vld [vmem:[%s151 + $0x1c0] sm:$0xff]
                %210 = vst [vmem:[%s152 + $0xe0] sm:$0xff] %v209
                %v211 = vld [vmem:[%s151 + $0x1c8] sm:$0xff]
                %212 = vst [vmem:[%s152 + $0xe8] sm:$0xff] %v211
                %v213 = vld [vmem:[%s151 + $0x1d0] sm:$0xff]
                %214 = vst [vmem:[%s152 + $0xf0] sm:$0xff] %v213
                %v215 = vld [vmem:[%s151 + $0x1d8] sm:$0xff]
                %216 = vst [vmem:[%s152 + $0xf8] sm:$0xff] %v215
                %v217 = vld [vmem:[%s151 + $0x200] sm:$0xff]
                %218 = vst [vmem:[%s152 + $0x100] sm:$0xff] %v217
                %v219 = vld [vmem:[%s151 + $0x208] sm:$0xff]
                %220 = vst [vmem:[%s152 + $0x108] sm:$0xff] %v219
                %v221 = vld [vmem:[%s151 + $0x210] sm:$0xff]
                %222 = vst [vmem:[%s152 + $0x110] sm:$0xff] %v221
                %v223 = vld [vmem:[%s151 + $0x218] sm:$0xff]
                %224 = vst [vmem:[%s152 + $0x118] sm:$0xff] %v223
                %v225 = vld [vmem:[%s151 + $0x240] sm:$0xff]
                %226 = vst [vmem:[%s152 + $0x120] sm:$0xff] %v225
                %v227 = vld [vmem:[%s151 + $0x248] sm:$0xff]
                %228 = vst [vmem:[%s152 + $0x128] sm:$0xff] %v227
                %v229 = vld [vmem:[%s151 + $0x250] sm:$0xff]
                %230 = vst [vmem:[%s152 + $0x130] sm:$0xff] %v229
                %v231 = vld [vmem:[%s151 + $0x258] sm:$0xff]
                %232 = vst [vmem:[%s152 + $0x138] sm:$0xff] %v231
                %v233 = vld [vmem:[%s151 + $0x280] sm:$0xff]
                %234 = vst [vmem:[%s152 + $0x140] sm:$0xff] %v233
                %v235 = vld [vmem:[%s151 + $0x288] sm:$0xff]
                %236 = vst [vmem:[%s152 + $0x148] sm:$0xff] %v235
                %v237 = vld [vmem:[%s151 + $0x290] sm:$0xff]
                %238 = vst [vmem:[%s152 + $0x150] sm:$0xff] %v237
                %v239 = vld [vmem:[%s151 + $0x298] sm:$0xff]
                %240 = vst [vmem:[%s152 + $0x158] sm:$0xff] %v239
                %v241 = vld [vmem:[%s151 + $0x2c0] sm:$0xff]
                %242 = vst [vmem:[%s152 + $0x160] sm:$0xff] %v241
                %v243 = vld [vmem:[%s151 + $0x2c8] sm:$0xff]
                %244 = vst [vmem:[%s152 + $0x168] sm:$0xff] %v243
                %v245 = vld [vmem:[%s151 + $0x2d0] sm:$0xff]
                %246 = vst [vmem:[%s152 + $0x170] sm:$0xff] %v245
                %v247 = vld [vmem:[%s151 + $0x2d8] sm:$0xff]
                %248 = vst [vmem:[%s152 + $0x178] sm:$0xff] %v247
                %v249 = vld [vmem:[%s151 + $0x300] sm:$0xff]
                %250 = vst [vmem:[%s152 + $0x180] sm:$0xff] %v249
                %v251 = vld [vmem:[%s151 + $0x308] sm:$0xff]
                %252 = vst [vmem:[%s152 + $0x188] sm:$0xff] %v251
                %v253 = vld [vmem:[%s151 + $0x310] sm:$0xff]
                %254 = vst [vmem:[%s152 + $0x190] sm:$0xff] %v253
                %v255 = vld [vmem:[%s151 + $0x318] sm:$0xff]
                %256 = vst [vmem:[%s152 + $0x198] sm:$0xff] %v255
                %v257 = vld [vmem:[%s151 + $0x340] sm:$0xff]
                %258 = vst [vmem:[%s152 + $0x1a0] sm:$0xff] %v257
                %v259 = vld [vmem:[%s151 + $0x348] sm:$0xff]
                %260 = vst [vmem:[%s152 + $0x1a8] sm:$0xff] %v259
                %v261 = vld [vmem:[%s151 + $0x350] sm:$0xff]
                %262 = vst [vmem:[%s152 + $0x1b0] sm:$0xff] %v261
                %v263 = vld [vmem:[%s151 + $0x358] sm:$0xff]
                %264 = vst [vmem:[%s152 + $0x1b8] sm:$0xff] %v263
                %v265 = vld [vmem:[%s151 + $0x380] sm:$0xff]
                %266 = vst [vmem:[%s152 + $0x1c0] sm:$0xff] %v265
                %v267 = vld [vmem:[%s151 + $0x388] sm:$0xff]
                %268 = vst [vmem:[%s152 + $0x1c8] sm:$0xff] %v267
                %v269 = vld [vmem:[%s151 + $0x390] sm:$0xff]
                %270 = vst [vmem:[%s152 + $0x1d0] sm:$0xff] %v269
                %v271 = vld [vmem:[%s151 + $0x398] sm:$0xff]
                %272 = vst [vmem:[%s152 + $0x1d8] sm:$0xff] %v271
                %v273 = vld [vmem:[%s151 + $0x3c0] sm:$0xff]
                %274 = vst [vmem:[%s152 + $0x1e0] sm:$0xff] %v273
                %v275 = vld [vmem:[%s151 + $0x3c8] sm:$0xff]
                %276 = vst [vmem:[%s152 + $0x1e8] sm:$0xff] %v275
                %v277 = vld [vmem:[%s151 + $0x3d0] sm:$0xff]
                %278 = vst [vmem:[%s152 + $0x1f0] sm:$0xff] %v277
                %v279 = vld [vmem:[%s151 + $0x3d8] sm:$0xff]
                %280 = vst [vmem:[%s152 + $0x1f8] sm:$0xff] %v279
              $region37: #{word2vec_forward_idx.1} parent=31 // loop_footer
                %s150 = sadd.s32 1, %s146
              $region38: #{word2vec_forward_idx.1} parent=31 // loop_footer_branch
                %145 = sbr.rel target = $region34
              $region39: #{word2vec_forward_idx.1} parent=31 // loop_exit
                _
            $region32: #{word2vec_forward_idx.1} parent=27 // pred_fallthru
              _
            // Predicated region
            $region40: #{word2vec_forward_idx.1} parent=27 // pred_check
              _
            $region41: #{word2vec_forward_idx.1} parent=27 // pred_check_branch
              %282 = sbr.rel target = $region43
            $region42: #{word2vec_forward_idx.1} parent=27 // pred_region
              _
            $region43: #{word2vec_forward_idx.1} parent=27 // pred_fallthru
              _
          $region28: #{word2vec_forward_idx.1} parent=23 // pred_fallthru
            _
          %283 = vnop
        $region24: #{word2vec_forward_idx.1} parent=15 // pred_fallthru
          _
      $region16: #{word2vec_forward_idx.1} parent=5 // pred_fallthru
        _
      %p284 = scmp.le.s32.totalorder 1, %s11
      %p285 = scmp.lt.s32.totalorder %s11, 5
      %p286 = pnand %p284, %p285
      %p287 = pneg %p286
      // Predicated region
      $region44: #{word2vec_forward_idx.1} parent=5 // pred_check
        _
      $region45: #{word2vec_forward_idx.1} parent=5 // pred_check_branch
        %289 = sbr.rel (%p286) target = $region47
      $region46: #{word2vec_forward_idx.1} parent=5 // pred_region
        %s290 = ssub.s32 %s11, 1
        %s291 = sand.u32 %s62, 1
        %s292 = sand.u32 %s62, 1
        %s293 = smul.addr %s292, 512
        %s294 = scalar_lea.vmem [#allocation2], %s293
        // Predicated region
        $region48: #{word2vec_forward_idx.1} parent=46 // pred_check
          %p295 = pneg %p75
        $region49: #{word2vec_forward_idx.1} parent=46 // pred_check_branch
          %297 = sbr.rel (%p295) target = $region51
        $region50: #{word2vec_forward_idx.1} parent=46 // pred_region
          _
        $region51: #{word2vec_forward_idx.1} parent=46 // pred_fallthru
          _
        %s298 = smul.u32 32, %s21
        %p299 = scmp.lt.s32.totalorder %s298, 63
        %s300 = scalar_select %p299, %s298, 63
        %s301 = smul.addr %s300, 4
        %s302 = scalar_lea.vmem %s0, %s301
        %p303 = pneg %p49
        %p304 = pneg %p46
        %s305 = sand.u32 %s62, 1
        %s306 = sand.u32 %s62, 1
        %s307 = smul.addr %s306, 512
        %s308 = scalar_lea.vmem [#allocation2], %s307
        %p309 = pneg %p75
        %p310 = pneg %p72
        %p311 = pneg %p103
        %p312 = pneg %p100
        %s313 = sand.u32 %s90, 1
        %s314 = scalar_lea.sflag [#allocation4], %s313
        %s315 = sand.u32 %s90, 1
        %s316 = smul.addr %s315, 2048
        %s317 = scalar_lea.vmem [#allocation3], %s316
        %s318 = smul.u32 32, %s21
        %p319 = scmp.lt.s32.totalorder %s318, 63
        %s320 = scalar_select %p319, %s318, 63
        %s321 = smul.addr %s320, 4
        %s322 = scalar_lea.vmem %s0, %s321
        %s323 = smul.u32 32, %s21
        %s324 = smul.u32 8, %s20
        %s325 = smul.u32 32, %s21
        %s326 = smul.u32 8, %s20
        %v328 = vld [vmem:[%s322] sm:$0xf]
        %v329 = vld [vmem:[%s322 + $0x4] sm:$0xf]
        %v330 = vld [vmem:[%s322 + $0x8] sm:$0xf]
        %v331 = vld [vmem:[%s322 + $0xc] sm:$0xf]
        %v332 = vld [vmem:[%s322 + $0x10] sm:$0xf]
        %v333 = vld [vmem:[%s322 + $0x14] sm:$0xf]
        %v334 = vld [vmem:[%s322 + $0x18] sm:$0xf]
        %v335 = vld [vmem:[%s322 + $0x1c] sm:$0xf]
        %v336 = vld [vmem:[%s322 + $0x20] sm:$0xf]
        %v337 = vld [vmem:[%s322 + $0x24] sm:$0xf]
        %v338 = vld [vmem:[%s322 + $0x28] sm:$0xf]
        %v339 = vld [vmem:[%s322 + $0x2c] sm:$0xf]
        %v340 = vld [vmem:[%s322 + $0x30] sm:$0xf]
        %v341 = vld [vmem:[%s322 + $0x34] sm:$0xf]
        %v342 = vld [vmem:[%s322 + $0x38] sm:$0xf]
        %v343 = vld [vmem:[%s322 + $0x3c] sm:$0xf]
        %v344 = vld [vmem:[%s322 + $0x40] sm:$0xf]
        %v345 = vld [vmem:[%s322 + $0x44] sm:$0xf]
        %v346 = vld [vmem:[%s322 + $0x48] sm:$0xf]
        %v347 = vld [vmem:[%s322 + $0x4c] sm:$0xf]
        %v348 = vld [vmem:[%s322 + $0x50] sm:$0xf]
        %v349 = vld [vmem:[%s322 + $0x54] sm:$0xf]
        %v350 = vld [vmem:[%s322 + $0x58] sm:$0xf]
        %v351 = vld [vmem:[%s322 + $0x5c] sm:$0xf]
        %v352 = vld [vmem:[%s322 + $0x60] sm:$0xf]
        %v353 = vld [vmem:[%s322 + $0x64] sm:$0xf]
        %v354 = vld [vmem:[%s322 + $0x68] sm:$0xf]
        %v355 = vld [vmem:[%s322 + $0x6c] sm:$0xf]
        %v356 = vld [vmem:[%s322 + $0x70] sm:$0xf]
        %v357 = vld [vmem:[%s322 + $0x74] sm:$0xf]
        %v358 = vld [vmem:[%s322 + $0x78] sm:$0xf]
        %v359 = vld [vmem:[%s322 + $0x7c] sm:$0xf]
        %v360 = vld [vmem:[%s294] sm:$0xff]
        %v361 = vld [vmem:[%s294 + $0x8] sm:$0xff]
        %v362 = vld [vmem:[%s294 + $0x10] sm:$0xff]
        %v363 = vld [vmem:[%s294 + $0x18] sm:$0xff]
        %v364 = vld [vmem:[%s294 + $0x20] sm:$0xff]
        %v365 = vld [vmem:[%s294 + $0x28] sm:$0xff]
        %v366 = vld [vmem:[%s294 + $0x30] sm:$0xff]
        %v367 = vld [vmem:[%s294 + $0x38] sm:$0xff]
        %v368 = vld [vmem:[%s294 + $0x40] sm:$0xff]
        %v369 = vld [vmem:[%s294 + $0x48] sm:$0xff]
        %v370 = vld [vmem:[%s294 + $0x50] sm:$0xff]
        %v371 = vld [vmem:[%s294 + $0x58] sm:$0xff]
        %v372 = vld [vmem:[%s294 + $0x60] sm:$0xff]
        %v373 = vld [vmem:[%s294 + $0x68] sm:$0xff]
        %v374 = vld [vmem:[%s294 + $0x70] sm:$0xff]
        %v375 = vld [vmem:[%s294 + $0x78] sm:$0xff]
        %v376 = vld [vmem:[%s294 + $0x80] sm:$0xff]
        %v377 = vld [vmem:[%s294 + $0x88] sm:$0xff]
        %v378 = vld [vmem:[%s294 + $0x90] sm:$0xff]
        %v379 = vld [vmem:[%s294 + $0x98] sm:$0xff]
        %v380 = vld [vmem:[%s294 + $0xa0] sm:$0xff]
        %v381 = vld [vmem:[%s294 + $0xa8] sm:$0xff]
        %v382 = vld [vmem:[%s294 + $0xb0] sm:$0xff]
        %v383 = vld [vmem:[%s294 + $0xb8] sm:$0xff]
        %v384 = vld [vmem:[%s294 + $0xc0] sm:$0xff]
        %v385 = vld [vmem:[%s294 + $0xc8] sm:$0xff]
        %v386 = vld [vmem:[%s294 + $0xd0] sm:$0xff]
        %v387 = vld [vmem:[%s294 + $0xd8] sm:$0xff]
        %v388 = vld [vmem:[%s294 + $0xe0] sm:$0xff]
        %v389 = vld [vmem:[%s294 + $0xe8] sm:$0xff]
        %v390 = vld [vmem:[%s294 + $0xf0] sm:$0xff]
        %v391 = vld [vmem:[%s294 + $0xf8] sm:$0xff]
        %v392 = vld [vmem:[%s294 + $0x100] sm:$0xff]
        %v393 = vld [vmem:[%s294 + $0x108] sm:$0xff]
        %v394 = vld [vmem:[%s294 + $0x110] sm:$0xff]
        %v395 = vld [vmem:[%s294 + $0x118] sm:$0xff]
        %v396 = vld [vmem:[%s294 + $0x120] sm:$0xff]
        %v397 = vld [vmem:[%s294 + $0x128] sm:$0xff]
        %v398 = vld [vmem:[%s294 + $0x130] sm:$0xff]
        %v399 = vld [vmem:[%s294 + $0x138] sm:$0xff]
        %v400 = vld [vmem:[%s294 + $0x140] sm:$0xff]
        %v401 = vld [vmem:[%s294 + $0x148] sm:$0xff]
        %v402 = vld [vmem:[%s294 + $0x150] sm:$0xff]
        %v403 = vld [vmem:[%s294 + $0x158] sm:$0xff]
        %v404 = vld [vmem:[%s294 + $0x160] sm:$0xff]
        %v405 = vld [vmem:[%s294 + $0x168] sm:$0xff]
        %v406 = vld [vmem:[%s294 + $0x170] sm:$0xff]
        %v407 = vld [vmem:[%s294 + $0x178] sm:$0xff]
        %v408 = vld [vmem:[%s294 + $0x180] sm:$0xff]
        %v409 = vld [vmem:[%s294 + $0x188] sm:$0xff]
        %v410 = vld [vmem:[%s294 + $0x190] sm:$0xff]
        %v411 = vld [vmem:[%s294 + $0x198] sm:$0xff]
        %v412 = vld [vmem:[%s294 + $0x1a0] sm:$0xff]
        %v413 = vld [vmem:[%s294 + $0x1a8] sm:$0xff]
        %v414 = vld [vmem:[%s294 + $0x1b0] sm:$0xff]
        %v415 = vld [vmem:[%s294 + $0x1b8] sm:$0xff]
        %v416 = vld [vmem:[%s294 + $0x1c0] sm:$0xff]
        %v417 = vld [vmem:[%s294 + $0x1c8] sm:$0xff]
        %v418 = vld [vmem:[%s294 + $0x1d0] sm:$0xff]
        %v419 = vld [vmem:[%s294 + $0x1d8] sm:$0xff]
        %v420 = vld [vmem:[%s294 + $0x1e0] sm:$0xff]
        %v421 = vld [vmem:[%s294 + $0x1e8] sm:$0xff]
        %v422 = vld [vmem:[%s294 + $0x1f0] sm:$0xff]
        %v423 = vld [vmem:[%s294 + $0x1f8] sm:$0xff]
        %v456 = vunpack.c.l.b16 %v328
        %v457 = vunpack.c.l.b16 %v329
        %v458 = vunpack.c.l.b16 %v330
        %v459 = vunpack.c.l.b16 %v331
        %v460 = vunpack.c.l.b16 %v332
        %v461 = vunpack.c.l.b16 %v333
        %v462 = vunpack.c.l.b16 %v334
        %v463 = vunpack.c.l.b16 %v335
        %v464 = vunpack.c.l.b16 %v336
        %v465 = vunpack.c.l.b16 %v337
        %v466 = vunpack.c.l.b16 %v338
        %v467 = vunpack.c.l.b16 %v339
        %v468 = vunpack.c.l.b16 %v340
        %v469 = vunpack.c.l.b16 %v341
        %v470 = vunpack.c.l.b16 %v342
        %v471 = vunpack.c.l.b16 %v343
        %v472 = vunpack.c.l.b16 %v344
        %v473 = vunpack.c.l.b16 %v345
        %v474 = vunpack.c.l.b16 %v346
        %v475 = vunpack.c.l.b16 %v347
        %v476 = vunpack.c.l.b16 %v348
        %v477 = vunpack.c.l.b16 %v349
        %v478 = vunpack.c.l.b16 %v350
        %v479 = vunpack.c.l.b16 %v351
        %v480 = vunpack.c.l.b16 %v352
        %v481 = vunpack.c.l.b16 %v353
        %v482 = vunpack.c.l.b16 %v354
        %v483 = vunpack.c.l.b16 %v355
        %v484 = vunpack.c.l.b16 %v356
        %v485 = vunpack.c.l.b16 %v357
        %v486 = vunpack.c.l.b16 %v358
        %v487 = vunpack.c.l.b16 %v359
        %v488 = vpack.c.b16 %v457, %v456
        %v489 = vpack.c.b16 %v459, %v458
        %v490 = vpack.c.b16 %v461, %v460
        %v491 = vpack.c.b16 %v463, %v462
        %v492 = vpack.c.b16 %v465, %v464
        %v493 = vpack.c.b16 %v467, %v466
        %v494 = vpack.c.b16 %v469, %v468
        %v495 = vpack.c.b16 %v471, %v470
        %v496 = vpack.c.b16 %v473, %v472
        %v497 = vpack.c.b16 %v475, %v474
        %v498 = vpack.c.b16 %v477, %v476
        %v499 = vpack.c.b16 %v479, %v478
        %v500 = vpack.c.b16 %v481, %v480
        %v501 = vpack.c.b16 %v483, %v482
        %v502 = vpack.c.b16 %v485, %v484
        %v503 = vpack.c.b16 %v487, %v486
        %v584 = vunpack.c.l.b16 %v360
        %v585 = vunpack.c.h.b16 %v360
        %v586 = vunpack.c.l.b16 %v361
        %v587 = vunpack.c.h.b16 %v361
        %v588 = vunpack.c.l.b16 %v362
        %v589 = vunpack.c.h.b16 %v362
        %v590 = vunpack.c.l.b16 %v363
        %v591 = vunpack.c.h.b16 %v363
        %v592 = vunpack.c.l.b16 %v364
        %v593 = vunpack.c.h.b16 %v364
        %v594 = vunpack.c.l.b16 %v365
        %v595 = vunpack.c.h.b16 %v365
        %v596 = vunpack.c.l.b16 %v366
        %v597 = vunpack.c.h.b16 %v366
        %v598 = vunpack.c.l.b16 %v367
        %v599 = vunpack.c.h.b16 %v367
        %v600 = vunpack.c.l.b16 %v368
        %v601 = vunpack.c.h.b16 %v368
        %v602 = vunpack.c.l.b16 %v369
        %v603 = vunpack.c.h.b16 %v369
        %v604 = vunpack.c.l.b16 %v370
        %v605 = vunpack.c.h.b16 %v370
        %v606 = vunpack.c.l.b16 %v371
        %v607 = vunpack.c.h.b16 %v371
        %v608 = vunpack.c.l.b16 %v372
        %v609 = vunpack.c.h.b16 %v372
        %v610 = vunpack.c.l.b16 %v373
        %v611 = vunpack.c.h.b16 %v373
        %v612 = vunpack.c.l.b16 %v374
        %v613 = vunpack.c.h.b16 %v374
        %v614 = vunpack.c.l.b16 %v375
        %v615 = vunpack.c.h.b16 %v375
        %v616 = vunpack.c.l.b16 %v376
        %v617 = vunpack.c.h.b16 %v376
        %v618 = vunpack.c.l.b16 %v377
        %v619 = vunpack.c.h.b16 %v377
        %v620 = vunpack.c.l.b16 %v378
        %v621 = vunpack.c.h.b16 %v378
        %v622 = vunpack.c.l.b16 %v379
        %v623 = vunpack.c.h.b16 %v379
        %v624 = vunpack.c.l.b16 %v380
        %v625 = vunpack.c.h.b16 %v380
        %v626 = vunpack.c.l.b16 %v381
        %v627 = vunpack.c.h.b16 %v381
        %v628 = vunpack.c.l.b16 %v382
        %v629 = vunpack.c.h.b16 %v382
        %v630 = vunpack.c.l.b16 %v383
        %v631 = vunpack.c.h.b16 %v383
        %v632 = vunpack.c.l.b16 %v384
        %v633 = vunpack.c.h.b16 %v384
        %v634 = vunpack.c.l.b16 %v385
        %v635 = vunpack.c.h.b16 %v385
        %v636 = vunpack.c.l.b16 %v386
        %v637 = vunpack.c.h.b16 %v386
        %v638 = vunpack.c.l.b16 %v387
        %v639 = vunpack.c.h.b16 %v387
        %v640 = vunpack.c.l.b16 %v388
        %v641 = vunpack.c.h.b16 %v388
        %v642 = vunpack.c.l.b16 %v389
        %v643 = vunpack.c.h.b16 %v389
        %v644 = vunpack.c.l.b16 %v390
        %v645 = vunpack.c.h.b16 %v390
        %v646 = vunpack.c.l.b16 %v391
        %v647 = vunpack.c.h.b16 %v391
        %v648 = vunpack.c.l.b16 %v392
        %v649 = vunpack.c.h.b16 %v392
        %v650 = vunpack.c.l.b16 %v393
        %v651 = vunpack.c.h.b16 %v393
        %v652 = vunpack.c.l.b16 %v394
        %v653 = vunpack.c.h.b16 %v394
        %v654 = vunpack.c.l.b16 %v395
        %v655 = vunpack.c.h.b16 %v395
        %v656 = vunpack.c.l.b16 %v396
        %v657 = vunpack.c.h.b16 %v396
        %v658 = vunpack.c.l.b16 %v397
        %v659 = vunpack.c.h.b16 %v397
        %v660 = vunpack.c.l.b16 %v398
        %v661 = vunpack.c.h.b16 %v398
        %v662 = vunpack.c.l.b16 %v399
        %v663 = vunpack.c.h.b16 %v399
        %v664 = vunpack.c.l.b16 %v400
        %v665 = vunpack.c.h.b16 %v400
        %v666 = vunpack.c.l.b16 %v401
        %v667 = vunpack.c.h.b16 %v401
        %v668 = vunpack.c.l.b16 %v402
        %v669 = vunpack.c.h.b16 %v402
        %v670 = vunpack.c.l.b16 %v403
        %v671 = vunpack.c.h.b16 %v403
        %v672 = vunpack.c.l.b16 %v404
        %v673 = vunpack.c.h.b16 %v404
        %v674 = vunpack.c.l.b16 %v405
        %v675 = vunpack.c.h.b16 %v405
        %v676 = vunpack.c.l.b16 %v406
        %v677 = vunpack.c.h.b16 %v406
        %v678 = vunpack.c.l.b16 %v407
        %v679 = vunpack.c.h.b16 %v407
        %v680 = vunpack.c.l.b16 %v408
        %v681 = vunpack.c.h.b16 %v408
        %v682 = vunpack.c.l.b16 %v409
        %v683 = vunpack.c.h.b16 %v409
        %v684 = vunpack.c.l.b16 %v410
        %v685 = vunpack.c.h.b16 %v410
        %v686 = vunpack.c.l.b16 %v411
        %v687 = vunpack.c.h.b16 %v411
        %v688 = vunpack.c.l.b16 %v412
        %v689 = vunpack.c.h.b16 %v412
        %v690 = vunpack.c.l.b16 %v413
        %v691 = vunpack.c.h.b16 %v413
        %v692 = vunpack.c.l.b16 %v414
        %v693 = vunpack.c.h.b16 %v414
        %v694 = vunpack.c.l.b16 %v415
        %v695 = vunpack.c.h.b16 %v415
        %v696 = vunpack.c.l.b16 %v416
        %v697 = vunpack.c.h.b16 %v416
        %v698 = vunpack.c.l.b16 %v417
        %v699 = vunpack.c.h.b16 %v417
        %v700 = vunpack.c.l.b16 %v418
        %v701 = vunpack.c.h.b16 %v418
        %v702 = vunpack.c.l.b16 %v419
        %v703 = vunpack.c.h.b16 %v419
        %v704 = vunpack.c.l.b16 %v420
        %v705 = vunpack.c.h.b16 %v420
        %v706 = vunpack.c.l.b16 %v421
        %v707 = vunpack.c.h.b16 %v421
        %v708 = vunpack.c.l.b16 %v422
        %v709 = vunpack.c.h.b16 %v422
        %v710 = vunpack.c.l.b16 %v423
        %v711 = vunpack.c.h.b16 %v423
        %v712 = vpack.c.b16 %v592, %v584
        %v713 = vpack.c.b16 %v593, %v585
        %v714 = vpack.c.b16 %v594, %v586
        %v715 = vpack.c.b16 %v595, %v587
        %v716 = vpack.c.b16 %v596, %v588
        %v717 = vpack.c.b16 %v597, %v589
        %v718 = vpack.c.b16 %v598, %v590
        %v719 = vpack.c.b16 %v599, %v591
        %v720 = vpack.c.b16 %v608, %v600
        %v721 = vpack.c.b16 %v609, %v601
        %v722 = vpack.c.b16 %v610, %v602
        %v723 = vpack.c.b16 %v611, %v603
        %v724 = vpack.c.b16 %v612, %v604
        %v725 = vpack.c.b16 %v613, %v605
        %v726 = vpack.c.b16 %v614, %v606
        %v727 = vpack.c.b16 %v615, %v607
        %v728 = vpack.c.b16 %v624, %v616
        %v729 = vpack.c.b16 %v625, %v617
        %v730 = vpack.c.b16 %v626, %v618
        %v731 = vpack.c.b16 %v627, %v619
        %v732 = vpack.c.b16 %v628, %v620
        %v733 = vpack.c.b16 %v629, %v621
        %v734 = vpack.c.b16 %v630, %v622
        %v735 = vpack.c.b16 %v631, %v623
        %v736 = vpack.c.b16 %v640, %v632
        %v737 = vpack.c.b16 %v641, %v633
        %v738 = vpack.c.b16 %v642, %v634
        %v739 = vpack.c.b16 %v643, %v635
        %v740 = vpack.c.b16 %v644, %v636
        %v741 = vpack.c.b16 %v645, %v637
        %v742 = vpack.c.b16 %v646, %v638
        %v743 = vpack.c.b16 %v647, %v639
        %v744 = vpack.c.b16 %v656, %v648
        %v745 = vpack.c.b16 %v657, %v649
        %v746 = vpack.c.b16 %v658, %v650
        %v747 = vpack.c.b16 %v659, %v651
        %v748 = vpack.c.b16 %v660, %v652
        %v749 = vpack.c.b16 %v661, %v653
        %v750 = vpack.c.b16 %v662, %v654
        %v751 = vpack.c.b16 %v663, %v655
        %v752 = vpack.c.b16 %v672, %v664
        %v753 = vpack.c.b16 %v673, %v665
        %v754 = vpack.c.b16 %v674, %v666
        %v755 = vpack.c.b16 %v675, %v667
        %v756 = vpack.c.b16 %v676, %v668
        %v757 = vpack.c.b16 %v677, %v669
        %v758 = vpack.c.b16 %v678, %v670
        %v759 = vpack.c.b16 %v679, %v671
        %v760 = vpack.c.b16 %v688, %v680
        %v761 = vpack.c.b16 %v689, %v681
        %v762 = vpack.c.b16 %v690, %v682
        %v763 = vpack.c.b16 %v691, %v683
        %v764 = vpack.c.b16 %v692, %v684
        %v765 = vpack.c.b16 %v693, %v685
        %v766 = vpack.c.b16 %v694, %v686
        %v767 = vpack.c.b16 %v695, %v687
        %v768 = vpack.c.b16 %v704, %v696
        %v769 = vpack.c.b16 %v705, %v697
        %v770 = vpack.c.b16 %v706, %v698
        %v771 = vpack.c.b16 %v707, %v699
        %v772 = vpack.c.b16 %v708, %v700
        %v773 = vpack.c.b16 %v709, %v701
        %v774 = vpack.c.b16 %v710, %v702
        %v775 = vpack.c.b16 %v711, %v703
        %840 = vmatprep.subr.bf16.mxu0 %v713
        %841 = vmatpush1.bf16.msra.mxu0 %v712
        %842 = vmatprep.subr.bf16.mxu0 %v721
        %843 = vmatpush1.bf16.msra.mxu0 %v720
        %844 = vmatprep.subr.bf16.mxu0 %v729
        %845 = vmatpush1.bf16.msra.mxu0 %v728
        %846 = vmatprep.subr.bf16.mxu0 %v737
        %847 = vmatpush1.bf16.msra.mxu0 %v736
        %848 = vmatprep.subr.bf16.mxu0 %v745
        %849 = vmatpush1.bf16.msra.mxu0 %v744
        %850 = vmatprep.subr.bf16.mxu0 %v753
        %851 = vmatpush1.bf16.msra.mxu0 %v752
        %852 = vmatprep.subr.bf16.mxu0 %v761
        %853 = vmatpush1.bf16.msra.mxu0 %v760
        %854 = vmatprep.subr.bf16.mxu0 %v769
        %855 = vmatpush1.bf16.msra.mxu0 %v768
        %856 = vmatprep.subr.bf16.mxu0 0
        %857 = vmatpush1.bf16.msra.mxu0 0
        %858 = vmatprep.subr.bf16.mxu0 0
        %859 = vmatpush1.bf16.msra.mxu0 0
        %860 = vmatprep.subr.bf16.mxu0 0
        %861 = vmatpush1.bf16.msra.mxu0 0
        %862 = vmatprep.subr.bf16.mxu0 0
        %863 = vmatpush1.bf16.msra.mxu0 0
        %864 = vmatprep.subr.bf16.mxu0 0
        %865 = vmatpush1.bf16.msra.mxu0 0
        %866 = vmatprep.subr.bf16.mxu0 0
        %867 = vmatpush1.bf16.msra.mxu0 0
        %868 = vmatprep.subr.bf16.mxu0 0
        %869 = vmatpush1.bf16.msra.mxu0 0
        %870 = vmatprep.subr.bf16.mxu0 0
        %871 = vmatpush1.bf16.msra.mxu0 0
        %872 = vmatprep.mubr.bf16.mxu0 0
        %873 = vmatmul.mubr.bf16.gmra.mrb[0].mxu0 %v488
        %v874 = vpop.f32.mrb[0].mxu0
        %v875 = vadd.f32 0.0, %v874
        %v876 = vpop.f32.mrb[0].mxu0
        %v877 = vadd.f32 0.0, %v876
        %v878 = vpop.f32.mrb[0].mxu0
        %v879 = vadd.f32 0.0, %v878
        %v880 = vpop.f32.mrb[0].mxu0
        %v881 = vadd.f32 0.0, %v880
        %882 = vmatprep.mubr.bf16.mxu0 0
        %883 = vmatmul.mubr.bf16.gmra.mrb[0].mxu0 %v489
        %v884 = vpop.f32.mrb[0].mxu0
        %v885 = vadd.f32 0.0, %v884
        %v886 = vpop.f32.mrb[0].mxu0
        %v887 = vadd.f32 0.0, %v886
        %v888 = vpop.f32.mrb[0].mxu0
        %v889 = vadd.f32 0.0, %v888
        %v890 = vpop.f32.mrb[0].mxu0
        %v891 = vadd.f32 0.0, %v890
        %892 = vmatprep.mubr.bf16.mxu0 0
        %893 = vmatmul.mubr.bf16.gmra.mrb[0].mxu0 %v490
        %v894 = vpop.f32.mrb[0].mxu0
        %v895 = vadd.f32 0.0, %v894
        %v896 = vpop.f32.mrb[0].mxu0
        %v897 = vadd.f32 0.0, %v896
        %v898 = vpop.f32.mrb[0].mxu0
        %v899 = vadd.f32 0.0, %v898
        %v900 = vpop.f32.mrb[0].mxu0
        %v901 = vadd.f32 0.0, %v900
        %902 = vmatprep.mubr.bf16.mxu0 0
        %903 = vmatmul.mubr.bf16.gmra.mrb[0].mxu0 %v491
        %v904 = vpop.f32.mrb[0].mxu0
        %v905 = vadd.f32 0.0, %v904
        %v906 = vpop.f32.mrb[0].mxu0
        %v907 = vadd.f32 0.0, %v906
        %v908 = vpop.f32.mrb[0].mxu0
        %v909 = vadd.f32 0.0, %v908
        %v910 = vpop.f32.mrb[0].mxu0
        %v911 = vadd.f32 0.0, %v910
        %912 = vmatprep.mubr.bf16.mxu0 0
        %913 = vmatmul.mubr.bf16.gmra.mrb[0].mxu0 %v492
        %v914 = vpop.f32.mrb[0].mxu0
        %v915 = vadd.f32 0.0, %v914
        %v916 = vpop.f32.mrb[0].mxu0
        %v917 = vadd.f32 0.0, %v916
        %v918 = vpop.f32.mrb[0].mxu0
        %v919 = vadd.f32 0.0, %v918
        %v920 = vpop.f32.mrb[0].mxu0
        %v921 = vadd.f32 0.0, %v920
        %922 = vmatprep.mubr.bf16.mxu0 0
        %923 = vmatmul.mubr.bf16.gmra.mrb[0].mxu0 %v493
        %v924 = vpop.f32.mrb[0].mxu0
        %v925 = vadd.f32 0.0, %v924
        %v926 = vpop.f32.mrb[0].mxu0
        %v927 = vadd.f32 0.0, %v926
        %v928 = vpop.f32.mrb[0].mxu0
        %v929 = vadd.f32 0.0, %v928
        %v930 = vpop.f32.mrb[0].mxu0
        %v931 = vadd.f32 0.0, %v930
        %932 = vmatprep.mubr.bf16.mxu0 0
        %933 = vmatmul.mubr.bf16.gmra.mrb[0].mxu0 %v494
        %v934 = vpop.f32.mrb[0].mxu0
        %v935 = vadd.f32 0.0, %v934
        %v936 = vpop.f32.mrb[0].mxu0
        %v937 = vadd.f32 0.0, %v936
        %v938 = vpop.f32.mrb[0].mxu0
        %v939 = vadd.f32 0.0, %v938
        %v940 = vpop.f32.mrb[0].mxu0
        %v941 = vadd.f32 0.0, %v940
        %942 = vmatprep.mubr.bf16.mxu0 0
        %943 = vmatmul.mubr.bf16.gmra.mrb[0].mxu0 %v495
        %v944 = vpop.f32.mrb[0].mxu0
        %v945 = vadd.f32 0.0, %v944
        %v946 = vpop.f32.mrb[0].mxu0
        %v947 = vadd.f32 0.0, %v946
        %v948 = vpop.f32.mrb[0].mxu0
        %v949 = vadd.f32 0.0, %v948
        %v950 = vpop.f32.mrb[0].mxu0
        %v951 = vadd.f32 0.0, %v950
        %952 = vmatprep.mubr.bf16.mxu0 0
        %953 = vmatmul.mubr.bf16.gmra.mrb[0].mxu0 %v496
        %v954 = vpop.f32.mrb[0].mxu0
        %v955 = vadd.f32 0.0, %v954
        %v956 = vpop.f32.mrb[0].mxu0
        %v957 = vadd.f32 0.0, %v956
        %v958 = vpop.f32.mrb[0].mxu0
        %v959 = vadd.f32 0.0, %v958
        %v960 = vpop.f32.mrb[0].mxu0
        %v961 = vadd.f32 0.0, %v960
        %962 = vmatprep.mubr.bf16.mxu0 0
        %963 = vmatmul.mubr.bf16.gmra.mrb[0].mxu0 %v497
        %v964 = vpop.f32.mrb[0].mxu0
        %v965 = vadd.f32 0.0, %v964
        %v966 = vpop.f32.mrb[0].mxu0
        %v967 = vadd.f32 0.0, %v966
        %v968 = vpop.f32.mrb[0].mxu0
        %v969 = vadd.f32 0.0, %v968
        %v970 = vpop.f32.mrb[0].mxu0
        %v971 = vadd.f32 0.0, %v970
        %972 = vmatprep.mubr.bf16.mxu0 0
        %973 = vmatmul.mubr.bf16.gmra.mrb[0].mxu0 %v498
        %v974 = vpop.f32.mrb[0].mxu0
        %v975 = vadd.f32 0.0, %v974
        %v976 = vpop.f32.mrb[0].mxu0
        %v977 = vadd.f32 0.0, %v976
        %v978 = vpop.f32.mrb[0].mxu0
        %v979 = vadd.f32 0.0, %v978
        %v980 = vpop.f32.mrb[0].mxu0
        %v981 = vadd.f32 0.0, %v980
        %982 = vmatprep.mubr.bf16.mxu0 0
        %983 = vmatmul.mubr.bf16.gmra.mrb[0].mxu0 %v499
        %v984 = vpop.f32.mrb[0].mxu0
        %v985 = vadd.f32 0.0, %v984
        %v986 = vpop.f32.mrb[0].mxu0
        %v987 = vadd.f32 0.0, %v986
        %v988 = vpop.f32.mrb[0].mxu0
        %v989 = vadd.f32 0.0, %v988
        %v990 = vpop.f32.mrb[0].mxu0
        %v991 = vadd.f32 0.0, %v990
        %992 = vmatprep.mubr.bf16.mxu0 0
        %993 = vmatmul.mubr.bf16.gmra.mrb[0].mxu0 %v500
        %v994 = vpop.f32.mrb[0].mxu0
        %v995 = vadd.f32 0.0, %v994
        %v996 = vpop.f32.mrb[0].mxu0
        %v997 = vadd.f32 0.0, %v996
        %v998 = vpop.f32.mrb[0].mxu0
        %v999 = vadd.f32 0.0, %v998
        %v1000 = vpop.f32.mrb[0].mxu0
        %v1001 = vadd.f32 0.0, %v1000
        %1002 = vmatprep.mubr.bf16.mxu0 0
        %1003 = vmatmul.mubr.bf16.gmra.mrb[0].mxu0 %v501
        %v1004 = vpop.f32.mrb[0].mxu0
        %v1005 = vadd.f32 0.0, %v1004
        %v1006 = vpop.f32.mrb[0].mxu0
        %v1007 = vadd.f32 0.0, %v1006
        %v1008 = vpop.f32.mrb[0].mxu0
        %v1009 = vadd.f32 0.0, %v1008
        %v1010 = vpop.f32.mrb[0].mxu0
        %v1011 = vadd.f32 0.0, %v1010
        %1012 = vmatprep.mubr.bf16.mxu0 0
        %1013 = vmatmul.mubr.bf16.gmra.mrb[0].mxu0 %v502
        %v1014 = vpop.f32.mrb[0].mxu0
        %v1015 = vadd.f32 0.0, %v1014
        %v1016 = vpop.f32.mrb[0].mxu0
        %v1017 = vadd.f32 0.0, %v1016
        %v1018 = vpop.f32.mrb[0].mxu0
        %v1019 = vadd.f32 0.0, %v1018
        %v1020 = vpop.f32.mrb[0].mxu0
        %v1021 = vadd.f32 0.0, %v1020
        %1022 = vmatprep.mubr.bf16.mxu0 0
        %1023 = vmatmul.mubr.bf16.gmra.mrb[0].mxu0 %v503
        %v1024 = vpop.f32.mrb[0].mxu0
        %v1025 = vadd.f32 0.0, %v1024
        %v1026 = vpop.f32.mrb[0].mxu0
        %v1027 = vadd.f32 0.0, %v1026
        %v1028 = vpop.f32.mrb[0].mxu0
        %v1029 = vadd.f32 0.0, %v1028
        %v1030 = vpop.f32.mrb[0].mxu0
        %v1031 = vadd.f32 0.0, %v1030
        %1032 = vdwg.mxu0
        %1033 = vmatprep.subr.bf16.mxu0 %v715
        %1034 = vmatpush1.bf16.msra.mxu0 %v714
        %1035 = vmatprep.subr.bf16.mxu0 %v723
        %1036 = vmatpush1.bf16.msra.mxu0 %v722
        %1037 = vmatprep.subr.bf16.mxu0 %v731
        %1038 = vmatpush1.bf16.msra.mxu0 %v730
        %1039 = vmatprep.subr.bf16.mxu0 %v739
        %1040 = vmatpush1.bf16.msra.mxu0 %v738
        %1041 = vmatprep.subr.bf16.mxu0 %v747
        %1042 = vmatpush1.bf16.msra.mxu0 %v746
        %1043 = vmatprep.subr.bf16.mxu0 %v755
        %1044 = vmatpush1.bf16.msra.mxu0 %v754
        %1045 = vmatprep.subr.bf16.mxu0 %v763
        %1046 = vmatpush1.bf16.msra.mxu0 %v762
        %1047 = vmatprep.subr.bf16.mxu0 %v771
        %1048 = vmatpush1.bf16.msra.mxu0 %v770
        %1049 = vmatprep.subr.bf16.mxu0 0
        %1050 = vmatpush1.bf16.msra.mxu0 0
        %1051 = vmatprep.subr.bf16.mxu0 0
        %1052 = vmatpush1.bf16.msra.mxu0 0
        %1053 = vmatprep.subr.bf16.mxu0 0
        %1054 = vmatpush1.bf16.msra.mxu0 0
        %1055 = vmatprep.subr.bf16.mxu0 0
        %1056 = vmatpush1.bf16.msra.mxu0 0
        %1057 = vmatprep.subr.bf16.mxu0 0
        %1058 = vmatpush1.bf16.msra.mxu0 0
        %1059 = vmatprep.subr.bf16.mxu0 0
        %1060 = vmatpush1.bf16.msra.mxu0 0
        %1061 = vmatprep.subr.bf16.mxu0 0
        %1062 = vmatpush1.bf16.msra.mxu0 0
        %1063 = vmatprep.subr.bf16.mxu0 0
        %1064 = vmatpush1.bf16.msra.mxu0 0
        %1065 = vmatprep.mubr.bf16.mxu0 0
        %1066 = vmatmul.mubr.bf16.gmra.mrb[0].mxu0 %v488
        %v1067 = vpop.f32.mrb[0].mxu0
        %v1068 = vadd.f32 0.0, %v1067
        %v1069 = vpop.f32.mrb[0].mxu0
        %v1070 = vadd.f32 0.0, %v1069
        %v1071 = vpop.f32.mrb[0].mxu0
        %v1072 = vadd.f32 0.0, %v1071
        %v1073 = vpop.f32.mrb[0].mxu0
        %v1074 = vadd.f32 0.0, %v1073
        %1075 = vmatprep.mubr.bf16.mxu0 0
        %1076 = vmatmul.mubr.bf16.gmra.mrb[0].mxu0 %v489
        %v1077 = vpop.f32.mrb[0].mxu0
        %v1078 = vadd.f32 0.0, %v1077
        %v1079 = vpop.f32.mrb[0].mxu0
        %v1080 = vadd.f32 0.0, %v1079
        %v1081 = vpop.f32.mrb[0].mxu0
        %v1082 = vadd.f32 0.0, %v1081
        %v1083 = vpop.f32.mrb[0].mxu0
        %v1084 = vadd.f32 0.0, %v1083
        %1085 = vmatprep.mubr.bf16.mxu0 0
        %1086 = vmatmul.mubr.bf16.gmra.mrb[0].mxu0 %v490
        %v1087 = vpop.f32.mrb[0].mxu0
        %v1088 = vadd.f32 0.0, %v1087
        %v1089 = vpop.f32.mrb[0].mxu0
        %v1090 = vadd.f32 0.0, %v1089
        %v1091 = vpop.f32.mrb[0].mxu0
        %v1092 = vadd.f32 0.0, %v1091
        %v1093 = vpop.f32.mrb[0].mxu0
        %v1094 = vadd.f32 0.0, %v1093
        %1095 = vmatprep.mubr.bf16.mxu0 0
        %1096 = vmatmul.mubr.bf16.gmra.mrb[0].mxu0 %v491
        %v1097 = vpop.f32.mrb[0].mxu0
        %v1098 = vadd.f32 0.0, %v1097
        %v1099 = vpop.f32.mrb[0].mxu0
        %v1100 = vadd.f32 0.0, %v1099
        %v1101 = vpop.f32.mrb[0].mxu0
        %v1102 = vadd.f32 0.0, %v1101
        %v1103 = vpop.f32.mrb[0].mxu0
        %v1104 = vadd.f32 0.0, %v1103
        %1105 = vmatprep.mubr.bf16.mxu0 0
        %1106 = vmatmul.mubr.bf16.gmra.mrb[0].mxu0 %v492
        %v1107 = vpop.f32.mrb[0].mxu0
        %v1108 = vadd.f32 0.0, %v1107
        %v1109 = vpop.f32.mrb[0].mxu0
        %v1110 = vadd.f32 0.0, %v1109
        %v1111 = vpop.f32.mrb[0].mxu0
        %v1112 = vadd.f32 0.0, %v1111
        %v1113 = vpop.f32.mrb[0].mxu0
        %v1114 = vadd.f32 0.0, %v1113
        %1115 = vmatprep.mubr.bf16.mxu0 0
        %1116 = vmatmul.mubr.bf16.gmra.mrb[0].mxu0 %v493
        %v1117 = vpop.f32.mrb[0].mxu0
        %v1118 = vadd.f32 0.0, %v1117
        %v1119 = vpop.f32.mrb[0].mxu0
        %v1120 = vadd.f32 0.0, %v1119
        %v1121 = vpop.f32.mrb[0].mxu0
        %v1122 = vadd.f32 0.0, %v1121
        %v1123 = vpop.f32.mrb[0].mxu0
        %v1124 = vadd.f32 0.0, %v1123
        %1125 = vmatprep.mubr.bf16.mxu0 0
        %1126 = vmatmul.mubr.bf16.gmra.mrb[0].mxu0 %v494
        %v1127 = vpop.f32.mrb[0].mxu0
        %v1128 = vadd.f32 0.0, %v1127
        %v1129 = vpop.f32.mrb[0].mxu0
        %v1130 = vadd.f32 0.0, %v1129
        %v1131 = vpop.f32.mrb[0].mxu0
        %v1132 = vadd.f32 0.0, %v1131
        %v1133 = vpop.f32.mrb[0].mxu0
        %v1134 = vadd.f32 0.0, %v1133
        %1135 = vmatprep.mubr.bf16.mxu0 0
        %1136 = vmatmul.mubr.bf16.gmra.mrb[0].mxu0 %v495
        %v1137 = vpop.f32.mrb[0].mxu0
        %v1138 = vadd.f32 0.0, %v1137
        %v1139 = vpop.f32.mrb[0].mxu0
        %v1140 = vadd.f32 0.0, %v1139
        %v1141 = vpop.f32.mrb[0].mxu0
        %v1142 = vadd.f32 0.0, %v1141
        %v1143 = vpop.f32.mrb[0].mxu0
        %v1144 = vadd.f32 0.0, %v1143
        %1145 = vmatprep.mubr.bf16.mxu0 0
        %1146 = vmatmul.mubr.bf16.gmra.mrb[0].mxu0 %v496
        %v1147 = vpop.f32.mrb[0].mxu0
        %v1148 = vadd.f32 0.0, %v1147
        %v1149 = vpop.f32.mrb[0].mxu0
        %v1150 = vadd.f32 0.0, %v1149
        %v1151 = vpop.f32.mrb[0].mxu0
        %v1152 = vadd.f32 0.0, %v1151
        %v1153 = vpop.f32.mrb[0].mxu0
        %v1154 = vadd.f32 0.0, %v1153
        %1155 = vmatprep.mubr.bf16.mxu0 0
        %1156 = vmatmul.mubr.bf16.gmra.mrb[0].mxu0 %v497
        %v1157 = vpop.f32.mrb[0].mxu0
        %v1158 = vadd.f32 0.0, %v1157
        %v1159 = vpop.f32.mrb[0].mxu0
        %v1160 = vadd.f32 0.0, %v1159
        %v1161 = vpop.f32.mrb[0].mxu0
        %v1162 = vadd.f32 0.0, %v1161
        %v1163 = vpop.f32.mrb[0].mxu0
        %v1164 = vadd.f32 0.0, %v1163
        %1165 = vmatprep.mubr.bf16.mxu0 0
        %1166 = vmatmul.mubr.bf16.gmra.mrb[0].mxu0 %v498
        %v1167 = vpop.f32.mrb[0].mxu0
        %v1168 = vadd.f32 0.0, %v1167
        %v1169 = vpop.f32.mrb[0].mxu0
        %v1170 = vadd.f32 0.0, %v1169
        %v1171 = vpop.f32.mrb[0].mxu0
        %v1172 = vadd.f32 0.0, %v1171
        %v1173 = vpop.f32.mrb[0].mxu0
        %v1174 = vadd.f32 0.0, %v1173
        %1175 = vmatprep.mubr.bf16.mxu0 0
        %1176 = vmatmul.mubr.bf16.gmra.mrb[0].mxu0 %v499
        %v1177 = vpop.f32.mrb[0].mxu0
        %v1178 = vadd.f32 0.0, %v1177
        %v1179 = vpop.f32.mrb[0].mxu0
        %v1180 = vadd.f32 0.0, %v1179
        %v1181 = vpop.f32.mrb[0].mxu0
        %v1182 = vadd.f32 0.0, %v1181
        %v1183 = vpop.f32.mrb[0].mxu0
        %v1184 = vadd.f32 0.0, %v1183
        %1185 = vmatprep.mubr.bf16.mxu0 0
        %1186 = vmatmul.mubr.bf16.gmra.mrb[0].mxu0 %v500
        %v1187 = vpop.f32.mrb[0].mxu0
        %v1188 = vadd.f32 0.0, %v1187
        %v1189 = vpop.f32.mrb[0].mxu0
        %v1190 = vadd.f32 0.0, %v1189
        %v1191 = vpop.f32.mrb[0].mxu0
        %v1192 = vadd.f32 0.0, %v1191
        %v1193 = vpop.f32.mrb[0].mxu0
        %v1194 = vadd.f32 0.0, %v1193
        %1195 = vmatprep.mubr.bf16.mxu0 0
        %1196 = vmatmul.mubr.bf16.gmra.mrb[0].mxu0 %v501
        %v1197 = vpop.f32.mrb[0].mxu0
        %v1198 = vadd.f32 0.0, %v1197
        %v1199 = vpop.f32.mrb[0].mxu0
        %v1200 = vadd.f32 0.0, %v1199
        %v1201 = vpop.f32.mrb[0].mxu0
        %v1202 = vadd.f32 0.0, %v1201
        %v1203 = vpop.f32.mrb[0].mxu0
        %v1204 = vadd.f32 0.0, %v1203
        %1205 = vmatprep.mubr.bf16.mxu0 0
        %1206 = vmatmul.mubr.bf16.gmra.mrb[0].mxu0 %v502
        %v1207 = vpop.f32.mrb[0].mxu0
        %v1208 = vadd.f32 0.0, %v1207
        %v1209 = vpop.f32.mrb[0].mxu0
        %v1210 = vadd.f32 0.0, %v1209
        %v1211 = vpop.f32.mrb[0].mxu0
        %v1212 = vadd.f32 0.0, %v1211
        %v1213 = vpop.f32.mrb[0].mxu0
        %v1214 = vadd.f32 0.0, %v1213
        %1215 = vmatprep.mubr.bf16.mxu0 0
        %1216 = vmatmul.mubr.bf16.gmra.mrb[0].mxu0 %v503
        %v1217 = vpop.f32.mrb[0].mxu0
        %v1218 = vadd.f32 0.0, %v1217
        %v1219 = vpop.f32.mrb[0].mxu0
        %v1220 = vadd.f32 0.0, %v1219
        %v1221 = vpop.f32.mrb[0].mxu0
        %v1222 = vadd.f32 0.0, %v1221
        %v1223 = vpop.f32.mrb[0].mxu0
        %v1224 = vadd.f32 0.0, %v1223
        %1225 = vdwg.mxu0
        %1226 = vmatprep.subr.bf16.mxu0 %v717
        %1227 = vmatpush1.bf16.msra.mxu0 %v716
        %1228 = vmatprep.subr.bf16.mxu0 %v725
        %1229 = vmatpush1.bf16.msra.mxu0 %v724
        %1230 = vmatprep.subr.bf16.mxu0 %v733
        %1231 = vmatpush1.bf16.msra.mxu0 %v732
        %1232 = vmatprep.subr.bf16.mxu0 %v741
        %1233 = vmatpush1.bf16.msra.mxu0 %v740
        %1234 = vmatprep.subr.bf16.mxu0 %v749
        %1235 = vmatpush1.bf16.msra.mxu0 %v748
        %1236 = vmatprep.subr.bf16.mxu0 %v757
        %1237 = vmatpush1.bf16.msra.mxu0 %v756
        %1238 = vmatprep.subr.bf16.mxu0 %v765
        %1239 = vmatpush1.bf16.msra.mxu0 %v764
        %1240 = vmatprep.subr.bf16.mxu0 %v773
        %1241 = vmatpush1.bf16.msra.mxu0 %v772
        %1242 = vmatprep.subr.bf16.mxu0 0
        %1243 = vmatpush1.bf16.msra.mxu0 0
        %1244 = vmatprep.subr.bf16.mxu0 0
        %1245 = vmatpush1.bf16.msra.mxu0 0
        %1246 = vmatprep.subr.bf16.mxu0 0
        %1247 = vmatpush1.bf16.msra.mxu0 0
        %1248 = vmatprep.subr.bf16.mxu0 0
        %1249 = vmatpush1.bf16.msra.mxu0 0
        %1250 = vmatprep.subr.bf16.mxu0 0
        %1251 = vmatpush1.bf16.msra.mxu0 0
        %1252 = vmatprep.subr.bf16.mxu0 0
        %1253 = vmatpush1.bf16.msra.mxu0 0
        %1254 = vmatprep.subr.bf16.mxu0 0
        %1255 = vmatpush1.bf16.msra.mxu0 0
        %1256 = vmatprep.subr.bf16.mxu0 0
        %1257 = vmatpush1.bf16.msra.mxu0 0
        %1258 = vmatprep.mubr.bf16.mxu0 0
        %1259 = vmatmul.mubr.bf16.gmra.mrb[0].mxu0 %v488
        %v1260 = vpop.f32.mrb[0].mxu0
        %v1261 = vadd.f32 0.0, %v1260
        %v1262 = vpop.f32.mrb[0].mxu0
        %v1263 = vadd.f32 0.0, %v1262
        %v1264 = vpop.f32.mrb[0].mxu0
        %v1265 = vadd.f32 0.0, %v1264
        %v1266 = vpop.f32.mrb[0].mxu0
        %v1267 = vadd.f32 0.0, %v1266
        %1268 = vmatprep.mubr.bf16.mxu0 0
        %1269 = vmatmul.mubr.bf16.gmra.mrb[0].mxu0 %v489
        %v1270 = vpop.f32.mrb[0].mxu0
        %v1271 = vadd.f32 0.0, %v1270
        %v1272 = vpop.f32.mrb[0].mxu0
        %v1273 = vadd.f32 0.0, %v1272
        %v1274 = vpop.f32.mrb[0].mxu0
        %v1275 = vadd.f32 0.0, %v1274
        %v1276 = vpop.f32.mrb[0].mxu0
        %v1277 = vadd.f32 0.0, %v1276
        %1278 = vmatprep.mubr.bf16.mxu0 0
        %1279 = vmatmul.mubr.bf16.gmra.mrb[0].mxu0 %v490
        %v1280 = vpop.f32.mrb[0].mxu0
        %v1281 = vadd.f32 0.0, %v1280
        %v1282 = vpop.f32.mrb[0].mxu0
        %v1283 = vadd.f32 0.0, %v1282
        %v1284 = vpop.f32.mrb[0].mxu0
        %v1285 = vadd.f32 0.0, %v1284
        %v1286 = vpop.f32.mrb[0].mxu0
        %v1287 = vadd.f32 0.0, %v1286
        %1288 = vmatprep.mubr.bf16.mxu0 0
        %1289 = vmatmul.mubr.bf16.gmra.mrb[0].mxu0 %v491
        %v1290 = vpop.f32.mrb[0].mxu0
        %v1291 = vadd.f32 0.0, %v1290
        %v1292 = vpop.f32.mrb[0].mxu0
        %v1293 = vadd.f32 0.0, %v1292
        %v1294 = vpop.f32.mrb[0].mxu0
        %v1295 = vadd.f32 0.0, %v1294
        %v1296 = vpop.f32.mrb[0].mxu0
        %v1297 = vadd.f32 0.0, %v1296
        %1298 = vmatprep.mubr.bf16.mxu0 0
        %1299 = vmatmul.mubr.bf16.gmra.mrb[0].mxu0 %v492
        %v1300 = vpop.f32.mrb[0].mxu0
        %v1301 = vadd.f32 0.0, %v1300
        %v1302 = vpop.f32.mrb[0].mxu0
        %v1303 = vadd.f32 0.0, %v1302
        %v1304 = vpop.f32.mrb[0].mxu0
        %v1305 = vadd.f32 0.0, %v1304
        %v1306 = vpop.f32.mrb[0].mxu0
        %v1307 = vadd.f32 0.0, %v1306
        %1308 = vmatprep.mubr.bf16.mxu0 0
        %1309 = vmatmul.mubr.bf16.gmra.mrb[0].mxu0 %v493
        %v1310 = vpop.f32.mrb[0].mxu0
        %v1311 = vadd.f32 0.0, %v1310
        %v1312 = vpop.f32.mrb[0].mxu0
        %v1313 = vadd.f32 0.0, %v1312
        %v1314 = vpop.f32.mrb[0].mxu0
        %v1315 = vadd.f32 0.0, %v1314
        %v1316 = vpop.f32.mrb[0].mxu0
        %v1317 = vadd.f32 0.0, %v1316
        %1318 = vmatprep.mubr.bf16.mxu0 0
        %1319 = vmatmul.mubr.bf16.gmra.mrb[0].mxu0 %v494
        %v1320 = vpop.f32.mrb[0].mxu0
        %v1321 = vadd.f32 0.0, %v1320
        %v1322 = vpop.f32.mrb[0].mxu0
        %v1323 = vadd.f32 0.0, %v1322
        %v1324 = vpop.f32.mrb[0].mxu0
        %v1325 = vadd.f32 0.0, %v1324
        %v1326 = vpop.f32.mrb[0].mxu0
        %v1327 = vadd.f32 0.0, %v1326
        %1328 = vmatprep.mubr.bf16.mxu0 0
        %1329 = vmatmul.mubr.bf16.gmra.mrb[0].mxu0 %v495
        %v1330 = vpop.f32.mrb[0].mxu0
        %v1331 = vadd.f32 0.0, %v1330
        %v1332 = vpop.f32.mrb[0].mxu0
        %v1333 = vadd.f32 0.0, %v1332
        %v1334 = vpop.f32.mrb[0].mxu0
        %v1335 = vadd.f32 0.0, %v1334
        %v1336 = vpop.f32.mrb[0].mxu0
        %v1337 = vadd.f32 0.0, %v1336
        %1338 = vmatprep.mubr.bf16.mxu0 0
        %1339 = vmatmul.mubr.bf16.gmra.mrb[0].mxu0 %v496
        %v1340 = vpop.f32.mrb[0].mxu0
        %v1341 = vadd.f32 0.0, %v1340
        %v1342 = vpop.f32.mrb[0].mxu0
        %v1343 = vadd.f32 0.0, %v1342
        %v1344 = vpop.f32.mrb[0].mxu0
        %v1345 = vadd.f32 0.0, %v1344
        %v1346 = vpop.f32.mrb[0].mxu0
        %v1347 = vadd.f32 0.0, %v1346
        %1348 = vmatprep.mubr.bf16.mxu0 0
        %1349 = vmatmul.mubr.bf16.gmra.mrb[0].mxu0 %v497
        %v1350 = vpop.f32.mrb[0].mxu0
        %v1351 = vadd.f32 0.0, %v1350
        %v1352 = vpop.f32.mrb[0].mxu0
        %v1353 = vadd.f32 0.0, %v1352
        %v1354 = vpop.f32.mrb[0].mxu0
        %v1355 = vadd.f32 0.0, %v1354
        %v1356 = vpop.f32.mrb[0].mxu0
        %v1357 = vadd.f32 0.0, %v1356
        %1358 = vmatprep.mubr.bf16.mxu0 0
        %1359 = vmatmul.mubr.bf16.gmra.mrb[0].mxu0 %v498
        %v1360 = vpop.f32.mrb[0].mxu0
        %v1361 = vadd.f32 0.0, %v1360
        %v1362 = vpop.f32.mrb[0].mxu0
        %v1363 = vadd.f32 0.0, %v1362
        %v1364 = vpop.f32.mrb[0].mxu0
        %v1365 = vadd.f32 0.0, %v1364
        %v1366 = vpop.f32.mrb[0].mxu0
        %v1367 = vadd.f32 0.0, %v1366
        %1368 = vmatprep.mubr.bf16.mxu0 0
        %1369 = vmatmul.mubr.bf16.gmra.mrb[0].mxu0 %v499
        %v1370 = vpop.f32.mrb[0].mxu0
        %v1371 = vadd.f32 0.0, %v1370
        %v1372 = vpop.f32.mrb[0].mxu0
        %v1373 = vadd.f32 0.0, %v1372
        %v1374 = vpop.f32.mrb[0].mxu0
        %v1375 = vadd.f32 0.0, %v1374
        %v1376 = vpop.f32.mrb[0].mxu0
        %v1377 = vadd.f32 0.0, %v1376
        %1378 = vmatprep.mubr.bf16.mxu0 0
        %1379 = vmatmul.mubr.bf16.gmra.mrb[0].mxu0 %v500
        %v1380 = vpop.f32.mrb[0].mxu0
        %v1381 = vadd.f32 0.0, %v1380
        %v1382 = vpop.f32.mrb[0].mxu0
        %v1383 = vadd.f32 0.0, %v1382
        %v1384 = vpop.f32.mrb[0].mxu0
        %v1385 = vadd.f32 0.0, %v1384
        %v1386 = vpop.f32.mrb[0].mxu0
        %v1387 = vadd.f32 0.0, %v1386
        %1388 = vmatprep.mubr.bf16.mxu0 0
        %1389 = vmatmul.mubr.bf16.gmra.mrb[0].mxu0 %v501
        %v1390 = vpop.f32.mrb[0].mxu0
        %v1391 = vadd.f32 0.0, %v1390
        %v1392 = vpop.f32.mrb[0].mxu0
        %v1393 = vadd.f32 0.0, %v1392
        %v1394 = vpop.f32.mrb[0].mxu0
        %v1395 = vadd.f32 0.0, %v1394
        %v1396 = vpop.f32.mrb[0].mxu0
        %v1397 = vadd.f32 0.0, %v1396
        %1398 = vmatprep.mubr.bf16.mxu0 0
        %1399 = vmatmul.mubr.bf16.gmra.mrb[0].mxu0 %v502
        %v1400 = vpop.f32.mrb[0].mxu0
        %v1401 = vadd.f32 0.0, %v1400
        %v1402 = vpop.f32.mrb[0].mxu0
        %v1403 = vadd.f32 0.0, %v1402
        %v1404 = vpop.f32.mrb[0].mxu0
        %v1405 = vadd.f32 0.0, %v1404
        %v1406 = vpop.f32.mrb[0].mxu0
        %v1407 = vadd.f32 0.0, %v1406
        %1408 = vmatprep.mubr.bf16.mxu0 0
        %1409 = vmatmul.mubr.bf16.gmra.mrb[0].mxu0 %v503
        %v1410 = vpop.f32.mrb[0].mxu0
        %v1411 = vadd.f32 0.0, %v1410
        %v1412 = vpop.f32.mrb[0].mxu0
        %v1413 = vadd.f32 0.0, %v1412
        %v1414 = vpop.f32.mrb[0].mxu0
        %v1415 = vadd.f32 0.0, %v1414
        %v1416 = vpop.f32.mrb[0].mxu0
        %v1417 = vadd.f32 0.0, %v1416
        %1418 = vdwg.mxu0
        %1419 = vmatprep.subr.bf16.mxu0 %v719
        %1420 = vmatpush1.bf16.msra.mxu0 %v718
        %1421 = vmatprep.subr.bf16.mxu0 %v727
        %1422 = vmatpush1.bf16.msra.mxu0 %v726
        %1423 = vmatprep.subr.bf16.mxu0 %v735
        %1424 = vmatpush1.bf16.msra.mxu0 %v734
        %1425 = vmatprep.subr.bf16.mxu0 %v743
        %1426 = vmatpush1.bf16.msra.mxu0 %v742
        %1427 = vmatprep.subr.bf16.mxu0 %v751
        %1428 = vmatpush1.bf16.msra.mxu0 %v750
        %1429 = vmatprep.subr.bf16.mxu0 %v759
        %1430 = vmatpush1.bf16.msra.mxu0 %v758
        %1431 = vmatprep.subr.bf16.mxu0 %v767
        %1432 = vmatpush1.bf16.msra.mxu0 %v766
        %1433 = vmatprep.subr.bf16.mxu0 %v775
        %1434 = vmatpush1.bf16.msra.mxu0 %v774
        %1435 = vmatprep.subr.bf16.mxu0 0
        %1436 = vmatpush1.bf16.msra.mxu0 0
        %1437 = vmatprep.subr.bf16.mxu0 0
        %1438 = vmatpush1.bf16.msra.mxu0 0
        %1439 = vmatprep.subr.bf16.mxu0 0
        %1440 = vmatpush1.bf16.msra.mxu0 0
        %1441 = vmatprep.subr.bf16.mxu0 0
        %1442 = vmatpush1.bf16.msra.mxu0 0
        %1443 = vmatprep.subr.bf16.mxu0 0
        %1444 = vmatpush1.bf16.msra.mxu0 0
        %1445 = vmatprep.subr.bf16.mxu0 0
        %1446 = vmatpush1.bf16.msra.mxu0 0
        %1447 = vmatprep.subr.bf16.mxu0 0
        %1448 = vmatpush1.bf16.msra.mxu0 0
        %1449 = vmatprep.subr.bf16.mxu0 0
        %1450 = vmatpush1.bf16.msra.mxu0 0
        %1451 = vmatprep.mubr.bf16.mxu0 0
        %1452 = vmatmul.mubr.bf16.gmra.mrb[0].mxu0 %v488
        %v1453 = vpop.f32.mrb[0].mxu0
        %v1454 = vadd.f32 0.0, %v1453
        %v1455 = vpop.f32.mrb[0].mxu0
        %v1456 = vadd.f32 0.0, %v1455
        %v1457 = vpop.f32.mrb[0].mxu0
        %v1458 = vadd.f32 0.0, %v1457
        %v1459 = vpop.f32.mrb[0].mxu0
        %v1460 = vadd.f32 0.0, %v1459
        %1461 = vmatprep.mubr.bf16.mxu0 0
        %1462 = vmatmul.mubr.bf16.gmra.mrb[0].mxu0 %v489
        %v1463 = vpop.f32.mrb[0].mxu0
        %v1464 = vadd.f32 0.0, %v1463
        %v1465 = vpop.f32.mrb[0].mxu0
        %v1466 = vadd.f32 0.0, %v1465
        %v1467 = vpop.f32.mrb[0].mxu0
        %v1468 = vadd.f32 0.0, %v1467
        %v1469 = vpop.f32.mrb[0].mxu0
        %v1470 = vadd.f32 0.0, %v1469
        %1471 = vmatprep.mubr.bf16.mxu0 0
        %1472 = vmatmul.mubr.bf16.gmra.mrb[0].mxu0 %v490
        %v1473 = vpop.f32.mrb[0].mxu0
        %v1474 = vadd.f32 0.0, %v1473
        %v1475 = vpop.f32.mrb[0].mxu0
        %v1476 = vadd.f32 0.0, %v1475
        %v1477 = vpop.f32.mrb[0].mxu0
        %v1478 = vadd.f32 0.0, %v1477
        %v1479 = vpop.f32.mrb[0].mxu0
        %v1480 = vadd.f32 0.0, %v1479
        %1481 = vmatprep.mubr.bf16.mxu0 0
        %1482 = vmatmul.mubr.bf16.gmra.mrb[0].mxu0 %v491
        %v1483 = vpop.f32.mrb[0].mxu0
        %v1484 = vadd.f32 0.0, %v1483
        %v1485 = vpop.f32.mrb[0].mxu0
        %v1486 = vadd.f32 0.0, %v1485
        %v1487 = vpop.f32.mrb[0].mxu0
        %v1488 = vadd.f32 0.0, %v1487
        %v1489 = vpop.f32.mrb[0].mxu0
        %v1490 = vadd.f32 0.0, %v1489
        %1491 = vmatprep.mubr.bf16.mxu0 0
        %1492 = vmatmul.mubr.bf16.gmra.mrb[0].mxu0 %v492
        %v1493 = vpop.f32.mrb[0].mxu0
        %v1494 = vadd.f32 0.0, %v1493
        %v1495 = vpop.f32.mrb[0].mxu0
        %v1496 = vadd.f32 0.0, %v1495
        %v1497 = vpop.f32.mrb[0].mxu0
        %v1498 = vadd.f32 0.0, %v1497
        %v1499 = vpop.f32.mrb[0].mxu0
        %v1500 = vadd.f32 0.0, %v1499
        %1501 = vmatprep.mubr.bf16.mxu0 0
        %1502 = vmatmul.mubr.bf16.gmra.mrb[0].mxu0 %v493
        %v1503 = vpop.f32.mrb[0].mxu0
        %v1504 = vadd.f32 0.0, %v1503
        %v1505 = vpop.f32.mrb[0].mxu0
        %v1506 = vadd.f32 0.0, %v1505
        %v1507 = vpop.f32.mrb[0].mxu0
        %v1508 = vadd.f32 0.0, %v1507
        %v1509 = vpop.f32.mrb[0].mxu0
        %v1510 = vadd.f32 0.0, %v1509
        %1511 = vmatprep.mubr.bf16.mxu0 0
        %1512 = vmatmul.mubr.bf16.gmra.mrb[0].mxu0 %v494
        %v1513 = vpop.f32.mrb[0].mxu0
        %v1514 = vadd.f32 0.0, %v1513
        %v1515 = vpop.f32.mrb[0].mxu0
        %v1516 = vadd.f32 0.0, %v1515
        %v1517 = vpop.f32.mrb[0].mxu0
        %v1518 = vadd.f32 0.0, %v1517
        %v1519 = vpop.f32.mrb[0].mxu0
        %v1520 = vadd.f32 0.0, %v1519
        %1521 = vmatprep.mubr.bf16.mxu0 0
        %1522 = vmatmul.mubr.bf16.gmra.mrb[0].mxu0 %v495
        %v1523 = vpop.f32.mrb[0].mxu0
        %v1524 = vadd.f32 0.0, %v1523
        %v1525 = vpop.f32.mrb[0].mxu0
        %v1526 = vadd.f32 0.0, %v1525
        %v1527 = vpop.f32.mrb[0].mxu0
        %v1528 = vadd.f32 0.0, %v1527
        %v1529 = vpop.f32.mrb[0].mxu0
        %v1530 = vadd.f32 0.0, %v1529
        %1531 = vmatprep.mubr.bf16.mxu0 0
        %1532 = vmatmul.mubr.bf16.gmra.mrb[0].mxu0 %v496
        %v1533 = vpop.f32.mrb[0].mxu0
        %v1534 = vadd.f32 0.0, %v1533
        %v1535 = vpop.f32.mrb[0].mxu0
        %v1536 = vadd.f32 0.0, %v1535
        %v1537 = vpop.f32.mrb[0].mxu0
        %v1538 = vadd.f32 0.0, %v1537
        %v1539 = vpop.f32.mrb[0].mxu0
        %v1540 = vadd.f32 0.0, %v1539
        %1541 = vmatprep.mubr.bf16.mxu0 0
        %1542 = vmatmul.mubr.bf16.gmra.mrb[0].mxu0 %v497
        %v1543 = vpop.f32.mrb[0].mxu0
        %v1544 = vadd.f32 0.0, %v1543
        %v1545 = vpop.f32.mrb[0].mxu0
        %v1546 = vadd.f32 0.0, %v1545
        %v1547 = vpop.f32.mrb[0].mxu0
        %v1548 = vadd.f32 0.0, %v1547
        %v1549 = vpop.f32.mrb[0].mxu0
        %v1550 = vadd.f32 0.0, %v1549
        %1551 = vmatprep.mubr.bf16.mxu0 0
        %1552 = vmatmul.mubr.bf16.gmra.mrb[0].mxu0 %v498
        %v1553 = vpop.f32.mrb[0].mxu0
        %v1554 = vadd.f32 0.0, %v1553
        %v1555 = vpop.f32.mrb[0].mxu0
        %v1556 = vadd.f32 0.0, %v1555
        %v1557 = vpop.f32.mrb[0].mxu0
        %v1558 = vadd.f32 0.0, %v1557
        %v1559 = vpop.f32.mrb[0].mxu0
        %v1560 = vadd.f32 0.0, %v1559
        %1561 = vmatprep.mubr.bf16.mxu0 0
        %1562 = vmatmul.mubr.bf16.gmra.mrb[0].mxu0 %v499
        %v1563 = vpop.f32.mrb[0].mxu0
        %v1564 = vadd.f32 0.0, %v1563
        %v1565 = vpop.f32.mrb[0].mxu0
        %v1566 = vadd.f32 0.0, %v1565
        %v1567 = vpop.f32.mrb[0].mxu0
        %v1568 = vadd.f32 0.0, %v1567
        %v1569 = vpop.f32.mrb[0].mxu0
        %v1570 = vadd.f32 0.0, %v1569
        %1571 = vmatprep.mubr.bf16.mxu0 0
        %1572 = vmatmul.mubr.bf16.gmra.mrb[0].mxu0 %v500
        %v1573 = vpop.f32.mrb[0].mxu0
        %v1574 = vadd.f32 0.0, %v1573
        %v1575 = vpop.f32.mrb[0].mxu0
        %v1576 = vadd.f32 0.0, %v1575
        %v1577 = vpop.f32.mrb[0].mxu0
        %v1578 = vadd.f32 0.0, %v1577
        %v1579 = vpop.f32.mrb[0].mxu0
        %v1580 = vadd.f32 0.0, %v1579
        %1581 = vmatprep.mubr.bf16.mxu0 0
        %1582 = vmatmul.mubr.bf16.gmra.mrb[0].mxu0 %v501
        %v1583 = vpop.f32.mrb[0].mxu0
        %v1584 = vadd.f32 0.0, %v1583
        %v1585 = vpop.f32.mrb[0].mxu0
        %v1586 = vadd.f32 0.0, %v1585
        %v1587 = vpop.f32.mrb[0].mxu0
        %v1588 = vadd.f32 0.0, %v1587
        %v1589 = vpop.f32.mrb[0].mxu0
        %v1590 = vadd.f32 0.0, %v1589
        %1591 = vmatprep.mubr.bf16.mxu0 0
        %1592 = vmatmul.mubr.bf16.gmra.mrb[0].mxu0 %v502
        %v1593 = vpop.f32.mrb[0].mxu0
        %v1594 = vadd.f32 0.0, %v1593
        %v1595 = vpop.f32.mrb[0].mxu0
        %v1596 = vadd.f32 0.0, %v1595
        %v1597 = vpop.f32.mrb[0].mxu0
        %v1598 = vadd.f32 0.0, %v1597
        %v1599 = vpop.f32.mrb[0].mxu0
        %v1600 = vadd.f32 0.0, %v1599
        %1601 = vmatprep.mubr.bf16.mxu0 0
        %1602 = vmatmul.mubr.bf16.gmra.mrb[0].mxu0 %v503
        %v1603 = vpop.f32.mrb[0].mxu0
        %v1604 = vadd.f32 0.0, %v1603
        %v1605 = vpop.f32.mrb[0].mxu0
        %v1606 = vadd.f32 0.0, %v1605
        %v1607 = vpop.f32.mrb[0].mxu0
        %v1608 = vadd.f32 0.0, %v1607
        %v1609 = vpop.f32.mrb[0].mxu0
        %v1610 = vadd.f32 0.0, %v1609
        %1611 = vdwg.mxu0
        %1612 = vst [vmem:[%s317] sm:$0xff] %v875
        %1613 = vst [vmem:[%s317 + $0x8] sm:$0xff] %v877
        %1614 = vst [vmem:[%s317 + $0x10] sm:$0xff] %v1068
        %1615 = vst [vmem:[%s317 + $0x18] sm:$0xff] %v1070
        %1616 = vst [vmem:[%s317 + $0x20] sm:$0xff] %v1261
        %1617 = vst [vmem:[%s317 + $0x28] sm:$0xff] %v1263
        %1618 = vst [vmem:[%s317 + $0x30] sm:$0xff] %v1454
        %1619 = vst [vmem:[%s317 + $0x38] sm:$0xff] %v1456
        %1620 = vst [vmem:[%s317 + $0x40] sm:$0xff] %v879
        %1621 = vst [vmem:[%s317 + $0x48] sm:$0xff] %v881
        %1622 = vst [vmem:[%s317 + $0x50] sm:$0xff] %v1072
        %1623 = vst [vmem:[%s317 + $0x58] sm:$0xff] %v1074
        %1624 = vst [vmem:[%s317 + $0x60] sm:$0xff] %v1265
        %1625 = vst [vmem:[%s317 + $0x68] sm:$0xff] %v1267
        %1626 = vst [vmem:[%s317 + $0x70] sm:$0xff] %v1458
        %1627 = vst [vmem:[%s317 + $0x78] sm:$0xff] %v1460
        %1628 = vst [vmem:[%s317 + $0x80] sm:$0xff] %v885
        %1629 = vst [vmem:[%s317 + $0x88] sm:$0xff] %v887
        %1630 = vst [vmem:[%s317 + $0x90] sm:$0xff] %v1078
        %1631 = vst [vmem:[%s317 + $0x98] sm:$0xff] %v1080
        %1632 = vst [vmem:[%s317 + $0xa0] sm:$0xff] %v1271
        %1633 = vst [vmem:[%s317 + $0xa8] sm:$0xff] %v1273
        %1634 = vst [vmem:[%s317 + $0xb0] sm:$0xff] %v1464
        %1635 = vst [vmem:[%s317 + $0xb8] sm:$0xff] %v1466
        %1636 = vst [vmem:[%s317 + $0xc0] sm:$0xff] %v889
        %1637 = vst [vmem:[%s317 + $0xc8] sm:$0xff] %v891
        %1638 = vst [vmem:[%s317 + $0xd0] sm:$0xff] %v1082
        %1639 = vst [vmem:[%s317 + $0xd8] sm:$0xff] %v1084
        %1640 = vst [vmem:[%s317 + $0xe0] sm:$0xff] %v1275
        %1641 = vst [vmem:[%s317 + $0xe8] sm:$0xff] %v1277
        %1642 = vst [vmem:[%s317 + $0xf0] sm:$0xff] %v1468
        %1643 = vst [vmem:[%s317 + $0xf8] sm:$0xff] %v1470
        %1644 = vst [vmem:[%s317 + $0x100] sm:$0xff] %v895
        %1645 = vst [vmem:[%s317 + $0x108] sm:$0xff] %v897
        %1646 = vst [vmem:[%s317 + $0x110] sm:$0xff] %v1088
        %1647 = vst [vmem:[%s317 + $0x118] sm:$0xff] %v1090
        %1648 = vst [vmem:[%s317 + $0x120] sm:$0xff] %v1281
        %1649 = vst [vmem:[%s317 + $0x128] sm:$0xff] %v1283
        %1650 = vst [vmem:[%s317 + $0x130] sm:$0xff] %v1474
        %1651 = vst [vmem:[%s317 + $0x138] sm:$0xff] %v1476
        %1652 = vst [vmem:[%s317 + $0x140] sm:$0xff] %v899
        %1653 = vst [vmem:[%s317 + $0x148] sm:$0xff] %v901
        %1654 = vst [vmem:[%s317 + $0x150] sm:$0xff] %v1092
        %1655 = vst [vmem:[%s317 + $0x158] sm:$0xff] %v1094
        %1656 = vst [vmem:[%s317 + $0x160] sm:$0xff] %v1285
        %1657 = vst [vmem:[%s317 + $0x168] sm:$0xff] %v1287
        %1658 = vst [vmem:[%s317 + $0x170] sm:$0xff] %v1478
        %1659 = vst [vmem:[%s317 + $0x178] sm:$0xff] %v1480
        %1660 = vst [vmem:[%s317 + $0x180] sm:$0xff] %v905
        %1661 = vst [vmem:[%s317 + $0x188] sm:$0xff] %v907
        %1662 = vst [vmem:[%s317 + $0x190] sm:$0xff] %v1098
        %1663 = vst [vmem:[%s317 + $0x198] sm:$0xff] %v1100
        %1664 = vst [vmem:[%s317 + $0x1a0] sm:$0xff] %v1291
        %1665 = vst [vmem:[%s317 + $0x1a8] sm:$0xff] %v1293
        %1666 = vst [vmem:[%s317 + $0x1b0] sm:$0xff] %v1484
        %1667 = vst [vmem:[%s317 + $0x1b8] sm:$0xff] %v1486
        %1668 = vst [vmem:[%s317 + $0x1c0] sm:$0xff] %v909
        %1669 = vst [vmem:[%s317 + $0x1c8] sm:$0xff] %v911
        %1670 = vst [vmem:[%s317 + $0x1d0] sm:$0xff] %v1102
        %1671 = vst [vmem:[%s317 + $0x1d8] sm:$0xff] %v1104
        %1672 = vst [vmem:[%s317 + $0x1e0] sm:$0xff] %v1295
        %1673 = vst [vmem:[%s317 + $0x1e8] sm:$0xff] %v1297
        %1674 = vst [vmem:[%s317 + $0x1f0] sm:$0xff] %v1488
        %1675 = vst [vmem:[%s317 + $0x1f8] sm:$0xff] %v1490
        %1676 = vst [vmem:[%s317 + $0x200] sm:$0xff] %v915
        %1677 = vst [vmem:[%s317 + $0x208] sm:$0xff] %v917
        %1678 = vst [vmem:[%s317 + $0x210] sm:$0xff] %v1108
        %1679 = vst [vmem:[%s317 + $0x218] sm:$0xff] %v1110
        %1680 = vst [vmem:[%s317 + $0x220] sm:$0xff] %v1301
        %1681 = vst [vmem:[%s317 + $0x228] sm:$0xff] %v1303
        %1682 = vst [vmem:[%s317 + $0x230] sm:$0xff] %v1494
        %1683 = vst [vmem:[%s317 + $0x238] sm:$0xff] %v1496
        %1684 = vst [vmem:[%s317 + $0x240] sm:$0xff] %v919
        %1685 = vst [vmem:[%s317 + $0x248] sm:$0xff] %v921
        %1686 = vst [vmem:[%s317 + $0x250] sm:$0xff] %v1112
        %1687 = vst [vmem:[%s317 + $0x258] sm:$0xff] %v1114
        %1688 = vst [vmem:[%s317 + $0x260] sm:$0xff] %v1305
        %1689 = vst [vmem:[%s317 + $0x268] sm:$0xff] %v1307
        %1690 = vst [vmem:[%s317 + $0x270] sm:$0xff] %v1498
        %1691 = vst [vmem:[%s317 + $0x278] sm:$0xff] %v1500
        %1692 = vst [vmem:[%s317 + $0x280] sm:$0xff] %v925
        %1693 = vst [vmem:[%s317 + $0x288] sm:$0xff] %v927
        %1694 = vst [vmem:[%s317 + $0x290] sm:$0xff] %v1118
        %1695 = vst [vmem:[%s317 + $0x298] sm:$0xff] %v1120
        %1696 = vst [vmem:[%s317 + $0x2a0] sm:$0xff] %v1311
        %1697 = vst [vmem:[%s317 + $0x2a8] sm:$0xff] %v1313
        %1698 = vst [vmem:[%s317 + $0x2b0] sm:$0xff] %v1504
        %1699 = vst [vmem:[%s317 + $0x2b8] sm:$0xff] %v1506
        %1700 = vst [vmem:[%s317 + $0x2c0] sm:$0xff] %v929
        %1701 = vst [vmem:[%s317 + $0x2c8] sm:$0xff] %v931
        %1702 = vst [vmem:[%s317 + $0x2d0] sm:$0xff] %v1122
        %1703 = vst [vmem:[%s317 + $0x2d8] sm:$0xff] %v1124
        %1704 = vst [vmem:[%s317 + $0x2e0] sm:$0xff] %v1315
        %1705 = vst [vmem:[%s317 + $0x2e8] sm:$0xff] %v1317
        %1706 = vst [vmem:[%s317 + $0x2f0] sm:$0xff] %v1508
        %1707 = vst [vmem:[%s317 + $0x2f8] sm:$0xff] %v1510
        %1708 = vst [vmem:[%s317 + $0x300] sm:$0xff] %v935
        %1709 = vst [vmem:[%s317 + $0x308] sm:$0xff] %v937
        %1710 = vst [vmem:[%s317 + $0x310] sm:$0xff] %v1128
        %1711 = vst [vmem:[%s317 + $0x318] sm:$0xff] %v1130
        %1712 = vst [vmem:[%s317 + $0x320] sm:$0xff] %v1321
        %1713 = vst [vmem:[%s317 + $0x328] sm:$0xff] %v1323
        %1714 = vst [vmem:[%s317 + $0x330] sm:$0xff] %v1514
        %1715 = vst [vmem:[%s317 + $0x338] sm:$0xff] %v1516
        %1716 = vst [vmem:[%s317 + $0x340] sm:$0xff] %v939
        %1717 = vst [vmem:[%s317 + $0x348] sm:$0xff] %v941
        %1718 = vst [vmem:[%s317 + $0x350] sm:$0xff] %v1132
        %1719 = vst [vmem:[%s317 + $0x358] sm:$0xff] %v1134
        %1720 = vst [vmem:[%s317 + $0x360] sm:$0xff] %v1325
        %1721 = vst [vmem:[%s317 + $0x368] sm:$0xff] %v1327
        %1722 = vst [vmem:[%s317 + $0x370] sm:$0xff] %v1518
        %1723 = vst [vmem:[%s317 + $0x378] sm:$0xff] %v1520
        %1724 = vst [vmem:[%s317 + $0x380] sm:$0xff] %v945
        %1725 = vst [vmem:[%s317 + $0x388] sm:$0xff] %v947
        %1726 = vst [vmem:[%s317 + $0x390] sm:$0xff] %v1138
        %1727 = vst [vmem:[%s317 + $0x398] sm:$0xff] %v1140
        %1728 = vst [vmem:[%s317 + $0x3a0] sm:$0xff] %v1331
        %1729 = vst [vmem:[%s317 + $0x3a8] sm:$0xff] %v1333
        %1730 = vst [vmem:[%s317 + $0x3b0] sm:$0xff] %v1524
        %1731 = vst [vmem:[%s317 + $0x3b8] sm:$0xff] %v1526
        %1732 = vst [vmem:[%s317 + $0x3c0] sm:$0xff] %v949
        %1733 = vst [vmem:[%s317 + $0x3c8] sm:$0xff] %v951
        %1734 = vst [vmem:[%s317 + $0x3d0] sm:$0xff] %v1142
        %1735 = vst [vmem:[%s317 + $0x3d8] sm:$0xff] %v1144
        %1736 = vst [vmem:[%s317 + $0x3e0] sm:$0xff] %v1335
        %1737 = vst [vmem:[%s317 + $0x3e8] sm:$0xff] %v1337
        %1738 = vst [vmem:[%s317 + $0x3f0] sm:$0xff] %v1528
        %1739 = vst [vmem:[%s317 + $0x3f8] sm:$0xff] %v1530
        %1740 = vst [vmem:[%s317 + $0x400] sm:$0xff] %v955
        %1741 = vst [vmem:[%s317 + $0x408] sm:$0xff] %v957
        %1742 = vst [vmem:[%s317 + $0x410] sm:$0xff] %v1148
        %1743 = vst [vmem:[%s317 + $0x418] sm:$0xff] %v1150
        %1744 = vst [vmem:[%s317 + $0x420] sm:$0xff] %v1341
        %1745 = vst [vmem:[%s317 + $0x428] sm:$0xff] %v1343
        %1746 = vst [vmem:[%s317 + $0x430] sm:$0xff] %v1534
        %1747 = vst [vmem:[%s317 + $0x438] sm:$0xff] %v1536
        %1748 = vst [vmem:[%s317 + $0x440] sm:$0xff] %v959
        %1749 = vst [vmem:[%s317 + $0x448] sm:$0xff] %v961
        %1750 = vst [vmem:[%s317 + $0x450] sm:$0xff] %v1152
        %1751 = vst [vmem:[%s317 + $0x458] sm:$0xff] %v1154
        %1752 = vst [vmem:[%s317 + $0x460] sm:$0xff] %v1345
        %1753 = vst [vmem:[%s317 + $0x468] sm:$0xff] %v1347
        %1754 = vst [vmem:[%s317 + $0x470] sm:$0xff] %v1538
        %1755 = vst [vmem:[%s317 + $0x478] sm:$0xff] %v1540
        %1756 = vst [vmem:[%s317 + $0x480] sm:$0xff] %v965
        %1757 = vst [vmem:[%s317 + $0x488] sm:$0xff] %v967
        %1758 = vst [vmem:[%s317 + $0x490] sm:$0xff] %v1158
        %1759 = vst [vmem:[%s317 + $0x498] sm:$0xff] %v1160
        %1760 = vst [vmem:[%s317 + $0x4a0] sm:$0xff] %v1351
        %1761 = vst [vmem:[%s317 + $0x4a8] sm:$0xff] %v1353
        %1762 = vst [vmem:[%s317 + $0x4b0] sm:$0xff] %v1544
        %1763 = vst [vmem:[%s317 + $0x4b8] sm:$0xff] %v1546
        %1764 = vst [vmem:[%s317 + $0x4c0] sm:$0xff] %v969
        %1765 = vst [vmem:[%s317 + $0x4c8] sm:$0xff] %v971
        %1766 = vst [vmem:[%s317 + $0x4d0] sm:$0xff] %v1162
        %1767 = vst [vmem:[%s317 + $0x4d8] sm:$0xff] %v1164
        %1768 = vst [vmem:[%s317 + $0x4e0] sm:$0xff] %v1355
        %1769 = vst [vmem:[%s317 + $0x4e8] sm:$0xff] %v1357
        %1770 = vst [vmem:[%s317 + $0x4f0] sm:$0xff] %v1548
        %1771 = vst [vmem:[%s317 + $0x4f8] sm:$0xff] %v1550
        %1772 = vst [vmem:[%s317 + $0x500] sm:$0xff] %v975
        %1773 = vst [vmem:[%s317 + $0x508] sm:$0xff] %v977
        %1774 = vst [vmem:[%s317 + $0x510] sm:$0xff] %v1168
        %1775 = vst [vmem:[%s317 + $0x518] sm:$0xff] %v1170
        %1776 = vst [vmem:[%s317 + $0x520] sm:$0xff] %v1361
        %1777 = vst [vmem:[%s317 + $0x528] sm:$0xff] %v1363
        %1778 = vst [vmem:[%s317 + $0x530] sm:$0xff] %v1554
        %1779 = vst [vmem:[%s317 + $0x538] sm:$0xff] %v1556
        %1780 = vst [vmem:[%s317 + $0x540] sm:$0xff] %v979
        %1781 = vst [vmem:[%s317 + $0x548] sm:$0xff] %v981
        %1782 = vst [vmem:[%s317 + $0x550] sm:$0xff] %v1172
        %1783 = vst [vmem:[%s317 + $0x558] sm:$0xff] %v1174
        %1784 = vst [vmem:[%s317 + $0x560] sm:$0xff] %v1365
        %1785 = vst [vmem:[%s317 + $0x568] sm:$0xff] %v1367
        %1786 = vst [vmem:[%s317 + $0x570] sm:$0xff] %v1558
        %1787 = vst [vmem:[%s317 + $0x578] sm:$0xff] %v1560
        %1788 = vst [vmem:[%s317 + $0x580] sm:$0xff] %v985
        %1789 = vst [vmem:[%s317 + $0x588] sm:$0xff] %v987
        %1790 = vst [vmem:[%s317 + $0x590] sm:$0xff] %v1178
        %1791 = vst [vmem:[%s317 + $0x598] sm:$0xff] %v1180
        %1792 = vst [vmem:[%s317 + $0x5a0] sm:$0xff] %v1371
        %1793 = vst [vmem:[%s317 + $0x5a8] sm:$0xff] %v1373
        %1794 = vst [vmem:[%s317 + $0x5b0] sm:$0xff] %v1564
        %1795 = vst [vmem:[%s317 + $0x5b8] sm:$0xff] %v1566
        %1796 = vst [vmem:[%s317 + $0x5c0] sm:$0xff] %v989
        %1797 = vst [vmem:[%s317 + $0x5c8] sm:$0xff] %v991
        %1798 = vst [vmem:[%s317 + $0x5d0] sm:$0xff] %v1182
        %1799 = vst [vmem:[%s317 + $0x5d8] sm:$0xff] %v1184
        %1800 = vst [vmem:[%s317 + $0x5e0] sm:$0xff] %v1375
        %1801 = vst [vmem:[%s317 + $0x5e8] sm:$0xff] %v1377
        %1802 = vst [vmem:[%s317 + $0x5f0] sm:$0xff] %v1568
        %1803 = vst [vmem:[%s317 + $0x5f8] sm:$0xff] %v1570
        %1804 = vst [vmem:[%s317 + $0x600] sm:$0xff] %v995
        %1805 = vst [vmem:[%s317 + $0x608] sm:$0xff] %v997
        %1806 = vst [vmem:[%s317 + $0x610] sm:$0xff] %v1188
        %1807 = vst [vmem:[%s317 + $0x618] sm:$0xff] %v1190
        %1808 = vst [vmem:[%s317 + $0x620] sm:$0xff] %v1381
        %1809 = vst [vmem:[%s317 + $0x628] sm:$0xff] %v1383
        %1810 = vst [vmem:[%s317 + $0x630] sm:$0xff] %v1574
        %1811 = vst [vmem:[%s317 + $0x638] sm:$0xff] %v1576
        %1812 = vst [vmem:[%s317 + $0x640] sm:$0xff] %v999
        %1813 = vst [vmem:[%s317 + $0x648] sm:$0xff] %v1001
        %1814 = vst [vmem:[%s317 + $0x650] sm:$0xff] %v1192
        %1815 = vst [vmem:[%s317 + $0x658] sm:$0xff] %v1194
        %1816 = vst [vmem:[%s317 + $0x660] sm:$0xff] %v1385
        %1817 = vst [vmem:[%s317 + $0x668] sm:$0xff] %v1387
        %1818 = vst [vmem:[%s317 + $0x670] sm:$0xff] %v1578
        %1819 = vst [vmem:[%s317 + $0x678] sm:$0xff] %v1580
        %1820 = vst [vmem:[%s317 + $0x680] sm:$0xff] %v1005
        %1821 = vst [vmem:[%s317 + $0x688] sm:$0xff] %v1007
        %1822 = vst [vmem:[%s317 + $0x690] sm:$0xff] %v1198
        %1823 = vst [vmem:[%s317 + $0x698] sm:$0xff] %v1200
        %1824 = vst [vmem:[%s317 + $0x6a0] sm:$0xff] %v1391
        %1825 = vst [vmem:[%s317 + $0x6a8] sm:$0xff] %v1393
        %1826 = vst [vmem:[%s317 + $0x6b0] sm:$0xff] %v1584
        %1827 = vst [vmem:[%s317 + $0x6b8] sm:$0xff] %v1586
        %1828 = vst [vmem:[%s317 + $0x6c0] sm:$0xff] %v1009
        %1829 = vst [vmem:[%s317 + $0x6c8] sm:$0xff] %v1011
        %1830 = vst [vmem:[%s317 + $0x6d0] sm:$0xff] %v1202
        %1831 = vst [vmem:[%s317 + $0x6d8] sm:$0xff] %v1204
        %1832 = vst [vmem:[%s317 + $0x6e0] sm:$0xff] %v1395
        %1833 = vst [vmem:[%s317 + $0x6e8] sm:$0xff] %v1397
        %1834 = vst [vmem:[%s317 + $0x6f0] sm:$0xff] %v1588
        %1835 = vst [vmem:[%s317 + $0x6f8] sm:$0xff] %v1590
        %1836 = vst [vmem:[%s317 + $0x700] sm:$0xff] %v1015
        %1837 = vst [vmem:[%s317 + $0x708] sm:$0xff] %v1017
        %1838 = vst [vmem:[%s317 + $0x710] sm:$0xff] %v1208
        %1839 = vst [vmem:[%s317 + $0x718] sm:$0xff] %v1210
        %1840 = vst [vmem:[%s317 + $0x720] sm:$0xff] %v1401
        %1841 = vst [vmem:[%s317 + $0x728] sm:$0xff] %v1403
        %1842 = vst [vmem:[%s317 + $0x730] sm:$0xff] %v1594
        %1843 = vst [vmem:[%s317 + $0x738] sm:$0xff] %v1596
        %1844 = vst [vmem:[%s317 + $0x740] sm:$0xff] %v1019
        %1845 = vst [vmem:[%s317 + $0x748] sm:$0xff] %v1021
        %1846 = vst [vmem:[%s317 + $0x750] sm:$0xff] %v1212
        %1847 = vst [vmem:[%s317 + $0x758] sm:$0xff] %v1214
        %1848 = vst [vmem:[%s317 + $0x760] sm:$0xff] %v1405
        %1849 = vst [vmem:[%s317 + $0x768] sm:$0xff] %v1407
        %1850 = vst [vmem:[%s317 + $0x770] sm:$0xff] %v1598
        %1851 = vst [vmem:[%s317 + $0x778] sm:$0xff] %v1600
        %1852 = vst [vmem:[%s317 + $0x780] sm:$0xff] %v1025
        %1853 = vst [vmem:[%s317 + $0x788] sm:$0xff] %v1027
        %1854 = vst [vmem:[%s317 + $0x790] sm:$0xff] %v1218
        %1855 = vst [vmem:[%s317 + $0x798] sm:$0xff] %v1220
        %1856 = vst [vmem:[%s317 + $0x7a0] sm:$0xff] %v1411
        %1857 = vst [vmem:[%s317 + $0x7a8] sm:$0xff] %v1413
        %1858 = vst [vmem:[%s317 + $0x7b0] sm:$0xff] %v1604
        %1859 = vst [vmem:[%s317 + $0x7b8] sm:$0xff] %v1606
        %1860 = vst [vmem:[%s317 + $0x7c0] sm:$0xff] %v1029
        %1861 = vst [vmem:[%s317 + $0x7c8] sm:$0xff] %v1031
        %1862 = vst [vmem:[%s317 + $0x7d0] sm:$0xff] %v1222
        %1863 = vst [vmem:[%s317 + $0x7d8] sm:$0xff] %v1224
        %1864 = vst [vmem:[%s317 + $0x7e0] sm:$0xff] %v1415
        %1865 = vst [vmem:[%s317 + $0x7e8] sm:$0xff] %v1417
        %1866 = vst [vmem:[%s317 + $0x7f0] sm:$0xff] %v1608
        %1867 = vst [vmem:[%s317 + $0x7f8] sm:$0xff] %v1610
        %s1868 = sand.u32 %s90, 1
        %s1869 = scalar_lea.sflag [#allocation4], %s1868
        %s1870 = sand.u32 %s90, 1
        %s1871 = smul.addr %s1870, 2048
        %s1872 = scalar_lea.vmem [#allocation3], %s1871
        // Predicated region
        $region52: #{word2vec_forward_idx.1} parent=46 // pred_check
          %p1873 = pneg %p100
        $region53: #{word2vec_forward_idx.1} parent=46 // pred_check_branch
          %1875 = sbr.rel (%p1873) target = $region55
        $region54: #{word2vec_forward_idx.1} parent=46 // pred_region
          %s1876 = smul.u32 32, %s21
          %s1877 = smul.u32 8, %s20
          %s1879 = ssub.s32 32768, 32768
          %1880 = vsyncadd %s1869, %s1879
          %s1881 = smul.addr %s1876, 16
          %s1882 = sadd.s32 %s1877, %s1881
          %s1883 = smul.addr %s1882, 128
          %s1884 = scalar_lea.hbm %s2, %s1883
          %s1885 = sshll.u32 %s1872, 4
          %s1886 = int_to_ptr.vmem [resolvable:$true] %s1885
          %1891 = dma.vmem_to_hbm [thread:$0]  %s1886, 32768, %s1884, %s1869, 1024, 2048, 64
        $region55: #{word2vec_forward_idx.1} parent=46 // pred_fallthru
          _
      $region47: #{word2vec_forward_idx.1} parent=5 // pred_fallthru
        _
      %p1892 = scmp.le.s32.totalorder 2, %s11
      // Predicated region
      $region56: #{word2vec_forward_idx.1} parent=5 // pred_check
        %p1893 = pneg %p1892
      $region57: #{word2vec_forward_idx.1} parent=5 // pred_check_branch
        %1895 = sbr.rel (%p1893) target = $region59
      $region58: #{word2vec_forward_idx.1} parent=5 // pred_region
        %s1896 = ssub.s32 %s11, 2
        // Predicated region
        $region60: #{word2vec_forward_idx.1} parent=58 // pred_check
          %p1897 = pneg %p106
        $region61: #{word2vec_forward_idx.1} parent=58 // pred_check_branch
          %1899 = sbr.rel (%p1897) target = $region63
        $region62: #{word2vec_forward_idx.1} parent=58 // pred_region
          %s1900 = sand.u32 %s91, 1
          %s1901 = scalar_lea.sflag [#allocation4], %s1900
          %s1902 = sand.u32 %s91, 1
          %s1903 = smul.addr %s1902, 2048
          %s1904 = scalar_lea.vmem [#allocation3], %s1903
          %1905 = dma.done %s1901, 32768
        $region63: #{word2vec_forward_idx.1} parent=58 // pred_fallthru
          _
      $region59: #{word2vec_forward_idx.1} parent=5 // pred_fallthru
        _
    $region6: #{word2vec_forward_idx.1} parent=1 // loop_footer
      %s15 = sadd.s32 1, %s11
    $region7: #{word2vec_forward_idx.1} parent=1 // loop_footer_branch
      %10 = sbr.rel target = $region3
    $region8: #{word2vec_forward_idx.1} parent=1 // loop_exit
      _
    %1906 = vsyncpa [#allocation4], 1
    %s1907 = scalar_lea.sflag [#allocation4], 1
    %1908 = vsyncpa %s1907, 1

</llo_original>
